<compile_context>
chip_gen: v5e
topology: v5e:2x2
jax: 0.10.0
libtpu: 0.0.40
codegen_flags: <defaults>
</compile_context>

<pallas_src>
import math

import jax
import jax.numpy as jnp
from jax.experimental import pallas as pl
from jax.experimental.pallas import tpu as pltpu


_INV_SQRT2 = 0.7071067811865476
_MAX_ROW_TILE = 512
_VMEM_BUDGET = 48 * 1024 * 1024   # planning budget (fits v7x's 64 MiB w/ headroom)
_VMEM_LIMIT = 64 * 1024 * 1024    # scoped-VMEM limit handed to Mosaic (<= physical on all gens)

_W_FRONT = ("mrfp_w1", "mrfp_b1", "mrfp_w2", "mrfp_b2",
            "tox_w1", "tox_b1", "tox_w2", "tox_b2")
_W_BACK = ("toc_w1", "toc_b1", "toc_w2", "toc_b2")
_WEIGHT_KEYS = ("mrfp_w1", "mrfp_w2", "tox_w1", "tox_w2", "toc_w1", "toc_w2")


def _gelu_exact(v):
    # PyTorch nn.GELU() default (approximate='none'): 0.5*x*(1+erf(x/sqrt(2)))
    return 0.5 * v * (1.0 + jax.lax.erf(v * _INV_SQRT2))


def _linear(a_f32, w_ref, b_ref):
    """y = a @ W + b with f32 accumulation. W is pre-cast (bf16 or f32) at stack time."""
    w = w_ref[0]                                  # (in, out), already compute dtype
    a = a_f32.astype(w.dtype)                     # no-op on the f32 path
    b = b_ref[0].astype(jnp.float32)              # (1, out), bias kept f32
    return jnp.dot(a, w, preferred_element_type=jnp.float32) + b


def _tile_is_active(rc_ref, row_block):
    """True iff this row tile contains at least one real (non-padding) row."""
    return pl.program_id(1) * row_block < rc_ref[pl.program_id(0)]


# ----------------------------------------------------------------------------
# Kernels (one (cond, row-tile) block per grid step; refs carry a size-1 cond dim)
# ----------------------------------------------------------------------------
def _front_kernel(rc_ref, x_ref, c_ref,
                  w1, b1, w2, b2, w3, b3, w4, b4,
                  x_out_ref, c_mid_ref):
    @pl.when(_tile_is_active(rc_ref, x_ref.shape[1]))
    def _():
        x = x_ref[0].astype(jnp.float32)          # (tm, d)
        c = c_ref[0].astype(jnp.float32)          # (tm, 4d)
        # mrfp: Linear(4d->4d) -> GELU -> Linear(4d->4d)
        h = _gelu_exact(_linear(c, w1, b1))
        c_mid = _linear(h, w2, b2)
        # cti_tox: Linear(4d->d) -> GELU -> Linear(d->d), residual into x
        t = _gelu_exact(_linear(c_mid, w3, b3))
        x_new = x + _linear(t, w4, b4)
        x_out_ref[0] = x_new.astype(x_out_ref.dtype)
        c_mid_ref[0] = c_mid.astype(c_mid_ref.dtype)


def _back_kernel(rc_ref, x_ref, c_mid_ref, w5, b5, w6, b6, c_out_ref):
    @pl.when(_tile_is_active(rc_ref, x_ref.shape[1]))
    def _():
        x = x_ref[0].astype(jnp.float32)
        # cti_toc: Linear(d->d) -> GELU -> Linear(d->4d), residual into c_mid
        u = _gelu_exact(_linear(x, w5, b5))
        c_out_ref[0] = (c_mid_ref[0].astype(jnp.float32)
                        + _linear(u, w6, b6)).astype(c_out_ref.dtype)


def _fused_kernel(rc_ref, x_ref, c_ref,
                  w1, b1, w2, b2, w3, b3, w4, b4, w5, b5, w6, b6,
                  x_out_ref, c_out_ref):
    # Full block (mrfp + cti_tox + cti_toc) when there are no backbone blocks:
    # c_mid stays in vregs/VMEM, never written to HBM.
    @pl.when(_tile_is_active(rc_ref, x_ref.shape[1]))
    def _():
        x = x_ref[0].astype(jnp.float32)
        c = c_ref[0].astype(jnp.float32)
        h = _gelu_exact(_linear(c, w1, b1))
        c_mid = _linear(h, w2, b2)
        t = _gelu_exact(_linear(c_mid, w3, b3))
        x_new = x + _linear(t, w4, b4)
        u = _gelu_exact(_linear(x_new, w5, b5))
        c_out = c_mid + _linear(u, w6, b6)
        x_out_ref[0] = x_new.astype(x_out_ref.dtype)
        c_out_ref[0] = c_out.astype(c_out_ref.dtype)


# ----------------------------------------------------------------------------
# BlockSpecs / pallas_call wrappers — activations stacked as [cond, N_pad, C]
# ----------------------------------------------------------------------------
def _row_spec(tm, ncol):
    # index_map receives the scalar-prefetch ref as a trailing positional arg.
    return pl.BlockSpec((1, tm, ncol), lambda cnd, r, rc: (cnd, r, 0))


def _w_spec(shape2d):
    # Weights only change across the cond axis -> single-buffer them in VMEM.
    return pl.BlockSpec((1,) + tuple(shape2d), lambda cnd, r, rc: (cnd, 0, 0),
                        pipeline_mode=pl.Buffered(1))


def _compiler_params():
    # cond (size 4) is the parallel axis -> v7x megacore shards conditions,
    # keeping one resident weight set per TensorCore; rows stay sequential.
    return pltpu.CompilerParams(
        dimension_semantics=("parallel", "arbitrary"),
        vmem_limit_bytes=_VMEM_LIMIT)


def _front_call(rc, xs, cs, sp, tm):
    ncond, n_pad, d = xs.shape
    d4 = cs.shape[-1]
    ws = [sp[k] for k in _W_FRONT]
    return pl.pallas_call(
        _front_kernel,
        out_shape=(jax.ShapeDtypeStruct((ncond, n_pad, d), xs.dtype),
                   jax.ShapeDtypeStruct((ncond, n_pad, d4), cs.dtype)),
        grid_spec=pltpu.PrefetchScalarGridSpec(
            num_scalar_prefetch=1,
            grid=(ncond, n_pad // tm),
            in_specs=[_row_spec(tm, d), _row_spec(tm, d4)]
                     + [_w_spec(w.shape[1:]) for w in ws],
            out_specs=[_row_spec(tm, d), _row_spec(tm, d4)],
        ),
        compiler_params=_compiler_params(),
    )(rc, xs, cs, *ws)


def _back_call(rc, xs, c_mid, sp, tm):
    ncond, n_pad, d = xs.shape
    d4 = c_mid.shape[-1]
    ws = [sp[k] for k in _W_BACK]
    return pl.pallas_call(
        _back_kernel,
        out_shape=jax.ShapeDtypeStruct((ncond, n_pad, d4), c_mid.dtype),
        grid_spec=pltpu.PrefetchScalarGridSpec(
            num_scalar_prefetch=1,
            grid=(ncond, n_pad // tm),
            in_specs=[_row_spec(tm, d), _row_spec(tm, d4)]
                     + [_w_spec(w.shape[1:]) for w in ws],
            out_specs=_row_spec(tm, d4),
        ),
        compiler_params=_compiler_params(),
    )(rc, xs, c_mid, *ws)


def _fused_call(rc, xs, cs, sp, tm):
    ncond, n_pad, d = xs.shape
    d4 = cs.shape[-1]
    ws = [sp[k] for k in (_W_FRONT + _W_BACK)]
    return pl.pallas_call(
        _fused_kernel,
        out_shape=(jax.ShapeDtypeStruct((ncond, n_pad, d), xs.dtype),
                   jax.ShapeDtypeStruct((ncond, n_pad, d4), cs.dtype)),
        grid_spec=pltpu.PrefetchScalarGridSpec(
            num_scalar_prefetch=1,
            grid=(ncond, n_pad // tm),
            in_specs=[_row_spec(tm, d), _row_spec(tm, d4)]
                     + [_w_spec(w.shape[1:]) for w in ws],
            out_specs=[_row_spec(tm, d), _row_spec(tm, d4)],
        ),
        compiler_params=_compiler_params(),
    )(rc, xs, cs, *ws)


# ----------------------------------------------------------------------------
# Parameter init, stacking / tiling helpers
# ----------------------------------------------------------------------------
def init_adapter_params(key, d_model, cond_num):
    """Deterministic synthetic init.  Weights are [in, out]."""
    d, d4 = d_model, 4 * d_model
    shapes = {
        "mrfp_w1": (d4, d4), "mrfp_b1": (1, d4),
        "mrfp_w2": (d4, d4), "mrfp_b2": (1, d4),
        "tox_w1": (d4, d),  "tox_b1": (1, d),
        "tox_w2": (d, d),   "tox_b2": (1, d),
        "toc_w1": (d, d),   "toc_b1": (1, d),
        "toc_w2": (d, d4),  "toc_b2": (1, d4),
    }
    params = []
    for _ in range(cond_num):
        layer = {}
        for name, shp in shapes.items():
            key, sub = jax.random.split(key)
            layer[name] = (0.05 * jax.random.normal(sub, shp)).astype(jnp.float32)
        params.append(layer)
    return params


def _stack_params(params, compute_dtype):
    """Stack to [cond, in, out]; pre-cast weights (not biases) to compute_dtype."""
    sp = {}
    for k in params[0]:
        stacked = jnp.stack([p[k] for p in params], axis=0)
        if compute_dtype is not None and k in _WEIGHT_KEYS:
            stacked = stacked.astype(compute_dtype)
        sp[k] = stacked
    return sp


def _stack_pad_rows(arr_list, n_pad, dtype=None):
    """[B, L_i, C] list -> [cond, n_pad, C] (zero row padding)."""
    out = []
    for a in arr_list:
        a2 = a.reshape(-1, a.shape[-1])
        if dtype is not None:
            a2 = a2.astype(dtype)
        n = a2.shape[0]
        if n < n_pad:
            a2 = jnp.pad(a2, ((0, n_pad - n), (0, 0)))
        out.append(a2)
    return jnp.stack(out, axis=0)


def _unstack(stacked, row_counts, shapes):
    return [stacked[i, :row_counts[i]].reshape(shapes[i])
            for i in range(len(shapes))]


def _round_up(x, m):
    return ((x + m - 1) // m) * m


def _group_vmem_bytes(sp, keys):
    total = 0
    for k in keys:
        a = sp[k]
        total += math.prod(a.shape[1:]) * a.dtype.itemsize
    return total


def _pick_row_tile(n_max, d, d4, w_vmem_bytes):
    """Largest row tile whose per-step working set fits the VMEM budget.

    Working set = single-buffered weights + double-buffered in/out activation
    tiles (f32) + f32 intermediates (h, c_mid, t, u, ...).
    Returns (n_pad, tm, fits).
    """
    n_pad0 = _round_up(max(n_max, 16), 16)           # 16: bf16 sublane packing
    per_row = (2 * 2 * (d + d4) + 3 * (d + d4)) * 4  # bytes per activation row
    cands = ([n_pad0] if n_pad0 <= _MAX_ROW_TILE else []) + \
            [t for t in (512, 256, 128, 64, 32, 16) if t <= min(n_pad0, _MAX_ROW_TILE)]
    for tm in cands:
        if w_vmem_bytes + tm * per_row <= _VMEM_BUDGET:
            return _round_up(n_pad0, tm), tm, True
    tm = 16
    return _round_up(n_pad0, tm), tm, False


# ----------------------------------------------------------------------------
# Module forward
# ----------------------------------------------------------------------------
def adapter_time_mixer_block(params, x_list, c_list, backbone_blocks,
                             *, compute_dtype=jnp.bfloat16):
    """Forward pass matching AdapterTimeMixerBlock.forward (cond_num == 4).

    compute_dtype=bfloat16 (default) -> bf16 MXU operands, f32 accumulate
    compute_dtype=None               -> f32 MXU operands (matches PyTorch fp32 closely)
    """
    assert len(x_list) == 4 and len(c_list) == 4
    shapes_x = [x.shape for x in x_list]
    shapes_c = [c.shape for c in c_list]
    row_counts = [x.shape[0] * x.shape[1] for x in x_list]
    d = x_list[0].shape[-1]
    d4 = c_list[0].shape[-1]

    sp = _stack_params(params, compute_dtype)
    w_fused = _group_vmem_bytes(sp, _W_FRONT + _W_BACK)
    n_pad, tm, fused_fits = _pick_row_tile(max(row_counts), d, d4, w_fused)

    rc = jnp.asarray(row_counts, dtype=jnp.int32)    # scalar-prefetched (SMEM)
    xs = _stack_pad_rows(x_list, n_pad)              # [4, n_pad, d]
    cs = _stack_pad_rows(c_list, n_pad)              # [4, n_pad, 4d]

    if len(backbone_blocks) == 0 and fused_fits:
        # Fully fused path: one kernel, c_mid never hits HBM.
        x_stk, c_stk = _fused_call(rc, xs, cs, sp, tm)
        return (_unstack(x_stk, row_counts, shapes_x),
                _unstack(c_stk, row_counts, shapes_c))

    # Split path: front half, external backbone, back half.
    x_stk, c_mid_stk = _front_call(rc, xs, cs, sp, tm)
    x_cur = _unstack(x_stk, row_counts, shapes_x)

    # TODO(synk): backbone_blocks are external modules passed into forward();
    # they run as plain JAX between the two Pallas halves, which forces one
    # unstack/restack round trip of x around the backbone.
    for backbone_block in backbone_blocks:
        x_cur = backbone_block(x_cur)

    xs2 = _stack_pad_rows(x_cur, n_pad, dtype=xs.dtype)
    c_stk = _back_call(rc, xs2, c_mid_stk, sp, tm)
    return x_cur, _unstack(c_stk, row_counts, shapes_c)


# ----------------------------------------------------------------------------
# Pure-JAX reference (for correctness check)
# ----------------------------------------------------------------------------
def _ref_forward(params, x_list, c_list, backbone_blocks):
    def lin(x, w, b):
        return x @ w + b[0]

    x_new, c_mid = [], []
    for i in range(4):
        p = params[i]
        h = lin(_gelu_exact(lin(c_list[i], p["mrfp_w1"], p["mrfp_b1"])),
                p["mrfp_w2"], p["mrfp_b2"])
        xr = lin(_gelu_exact(lin(h, p["tox_w1"], p["tox_b1"])),
                 p["tox_w2"], p["tox_b2"])
        x_new.append(x_list[i] + xr)
        c_mid.append(h)
    for bb in backbone_blocks:
        x_new = bb(x_new)
    c_out = []
    for i in range(4):
        p = params[i]
        cr = lin(_gelu_exact(lin(x_new[i], p["toc_w1"], p["toc_b1"])),
                 p["toc_w2"], p["toc_b2"])
        c_out.append(c_mid[i] + cr)
    return x_new, c_out


# ----------------------------------------------------------------------------
if __name__ == "__main__":
    key = jax.random.PRNGKey(0)
    d_model, cond_num, batch = 32, 4, 2

    key, pkey = jax.random.split(key)
    params = init_adapter_params(pkey, d_model, cond_num)

    def make_inputs(key, seq_lens):
        xs, cs = [], []
        for L in seq_lens:
            key, k1, k2 = jax.random.split(key, 3)
            xs.append(jax.random.normal(k1, (batch, L, d_model), dtype=jnp.float32))
            cs.append(jax.random.normal(k2, (batch, L, 4 * d_model), dtype=jnp.float32))
        return key, xs, cs

    # TimeMixer multi-scale sequence lengths (2x downsampling per scale)
    key, x_list, c_list = make_inputs(key, [16, 8, 4, 2])
    x_ref, c_ref = _ref_forward(params, x_list, c_list, [])

    # ---- case 1: f32 operands, fused single-kernel path (bit-close to fp32) -
    x_o, c_o = adapter_time_mixer_block(params, x_list, c_list, [],
                                        compute_dtype=None)
    jax.block_until_ready(x_o); jax.block_until_ready(c_o)
    for a, b in zip(x_o + c_o, x_ref + c_ref):
        assert float(jnp.max(jnp.abs(a - b))) < 1e-4

    # ---- case 2: default bf16 MXU operands (f32 accumulate), loose tol ------
    x_o, c_o = adapter_time_mixer_block(params, x_list, c_list, [])
    jax.block_until_ready(x_o); jax.block_until_ready(c_o)
    for a, b in zip(x_o + c_o, x_ref + c_ref):
        assert float(jnp.max(jnp.abs(a - b))) < 1e-1

    # ---- case 3: non-empty backbone -> front/back split path (f32) ----------
    backbone_blocks = [lambda xl: [jnp.tanh(x) + 0.1 for x in xl]]
    x_ref3, c_ref3 = _ref_forward(params, x_list, c_list, backbone_blocks)
    x_o, c_o = adapter_time_mixer_block(params, x_list, c_list, backbone_blocks,
                                        compute_dtype=None)
    jax.block_until_ready(x_o); jax.block_until_ready(c_o)
    for a, b in zip(x_o + c_o, x_ref3 + c_ref3):
        assert float(jnp.max(jnp.abs(a - b))) < 1e-4

    # ---- case 4: longer scales -> multiple row tiles, exercises the pl.when
    #      skip of fully-padded tiles for the shorter (downsampled) scales -----
    key, x_list4, c_list4 = make_inputs(key, [512, 256, 128, 64])
    x_ref4, c_ref4 = _ref_forward(params, x_list4, c_list4, [])
    x_o, c_o = adapter_time_mixer_block(params, x_list4, c_list4, [],
                                        compute_dtype=None)
    jax.block_until_ready(x_o); jax.block_until_ready(c_o)
    for a, b in zip(x_o + c_o, x_ref4 + c_ref4):
        assert float(jnp.max(jnp.abs(a - b))) < 1e-4

    print("KERNEL_OK")
</pallas_src>

<mosaic_0001>
module attributes {stable_mosaic.version = 11 : i64} {
  func.func @_fused_kernel(%arg0: i32, %arg1: i32, %arg2: memref<4xi32, #tpu.memory_space<smem>>, %arg3: memref<1x32x32xf32, #tpu.memory_space<vmem>>, %arg4: memref<1x32x128xf32, #tpu.memory_space<vmem>>, %arg5: memref<1x128x128xf32, #tpu.memory_space<vmem>>, %arg6: memref<1x1x128xf32, #tpu.memory_space<vmem>>, %arg7: memref<1x128x128xf32, #tpu.memory_space<vmem>>, %arg8: memref<1x1x128xf32, #tpu.memory_space<vmem>>, %arg9: memref<1x128x32xf32, #tpu.memory_space<vmem>>, %arg10: memref<1x1x32xf32, #tpu.memory_space<vmem>>, %arg11: memref<1x32x32xf32, #tpu.memory_space<vmem>>, %arg12: memref<1x1x32xf32, #tpu.memory_space<vmem>>, %arg13: memref<1x32x32xf32, #tpu.memory_space<vmem>>, %arg14: memref<1x1x32xf32, #tpu.memory_space<vmem>>, %arg15: memref<1x32x128xf32, #tpu.memory_space<vmem>>, %arg16: memref<1x1x128xf32, #tpu.memory_space<vmem>>, %arg17: memref<1x32x32xf32, #tpu.memory_space<vmem>>, %arg18: memref<1x32x128xf32, #tpu.memory_space<vmem>>) attributes {dimension_semantics = [#tpu.dimension_semantics<parallel>, #tpu.dimension_semantics<arbitrary>], iteration_bounds = array<i64: 4, 1>, scalar_prefetch = 1 : i64, scratch_operands = 0 : i64, tpu.core_type = #tpu.core_type<tc>, window_params = [{transform_indices = @transform_0, window_bounds = array<i64: 1, 32, 32>}, {transform_indices = @transform_1, window_bounds = array<i64: 1, 32, 128>}, {pipeline_mode = #tpu.pipeline_mode<synchronous>, transform_indices = @transform_2, window_bounds = array<i64: 1, 128, 128>}, {pipeline_mode = #tpu.pipeline_mode<synchronous>, transform_indices = @transform_3, window_bounds = array<i64: 1, 1, 128>}, {pipeline_mode = #tpu.pipeline_mode<synchronous>, transform_indices = @transform_4, window_bounds = array<i64: 1, 128, 128>}, {pipeline_mode = #tpu.pipeline_mode<synchronous>, transform_indices = @transform_5, window_bounds = array<i64: 1, 1, 128>}, {pipeline_mode = #tpu.pipeline_mode<synchronous>, transform_indices = @transform_6, window_bounds = array<i64: 1, 128, 32>}, {pipeline_mode = #tpu.pipeline_mode<synchronous>, transform_indices = @transform_7, window_bounds = array<i64: 1, 1, 32>}, {pipeline_mode = #tpu.pipeline_mode<synchronous>, transform_indices = @transform_8, window_bounds = array<i64: 1, 32, 32>}, {pipeline_mode = #tpu.pipeline_mode<synchronous>, transform_indices = @transform_9, window_bounds = array<i64: 1, 1, 32>}, {pipeline_mode = #tpu.pipeline_mode<synchronous>, transform_indices = @transform_10, window_bounds = array<i64: 1, 32, 32>}, {pipeline_mode = #tpu.pipeline_mode<synchronous>, transform_indices = @transform_11, window_bounds = array<i64: 1, 1, 32>}, {pipeline_mode = #tpu.pipeline_mode<synchronous>, transform_indices = @transform_12, window_bounds = array<i64: 1, 32, 128>}, {pipeline_mode = #tpu.pipeline_mode<synchronous>, transform_indices = @transform_13, window_bounds = array<i64: 1, 1, 128>}, {transform_indices = @transform_14, window_bounds = array<i64: 1, 32, 32>}, {transform_indices = @transform_15, window_bounds = array<i64: 1, 32, 128>}]} {
    %c32_i32 = arith.constant 32 : i32
    %0 = arith.muli %arg1, %c32_i32 : i32
    %1 = arith.index_cast %arg0 : i32 to index
    %2 = memref.load %arg2[%1] : memref<4xi32, #tpu.memory_space<smem>>
    %3 = arith.cmpi slt, %0, %2 : i32
    %4 = arith.extui %3 : i1 to i32
    %c0_i32 = arith.constant 0 : i32
    %5 = arith.cmpi ne, %4, %c0_i32 : i32
    scf.if %5 {
      %c0 = arith.constant 0 : index
      %c0_0 = arith.constant 0 : index
      %c0_1 = arith.constant 0 : index
      %6 = vector.load %arg3[%c0, %c0_0, %c0_1] : memref<1x32x32xf32, #tpu.memory_space<vmem>>, vector<1x32x32xf32>
      %7 = vector.shape_cast %6 : vector<1x32x32xf32> to vector<32x32xf32>
      %c0_2 = arith.constant 0 : index
      %c0_3 = arith.constant 0 : index
      %c0_4 = arith.constant 0 : index
      %8 = vector.load %arg4[%c0_2, %c0_3, %c0_4] : memref<1x32x128xf32, #tpu.memory_space<vmem>>, vector<1x32x128xf32>
      %9 = vector.shape_cast %8 : vector<1x32x128xf32> to vector<32x128xf32>
      %c0_5 = arith.constant 0 : index
      %c0_6 = arith.constant 0 : index
      %c0_7 = arith.constant 0 : index
      %10 = vector.load %arg5[%c0_5, %c0_6, %c0_7] : memref<1x128x128xf32, #tpu.memory_space<vmem>>, vector<1x128x128xf32>
      %11 = vector.shape_cast %10 : vector<1x128x128xf32> to vector<128x128xf32>
      %c0_8 = arith.constant 0 : index
      %c0_9 = arith.constant 0 : index
      %c0_10 = arith.constant 0 : index
      %12 = vector.load %arg6[%c0_8, %c0_9, %c0_10] : memref<1x1x128xf32, #tpu.memory_space<vmem>>, vector<1x1x128xf32>
      %13 = vector.shape_cast %12 : vector<1x1x128xf32> to vector<1x128xf32>
      %cst = arith.constant dense<0.000000e+00> : vector<32x128xf32>
      %14 = tpu.matmul %9, %11, %cst {dimension_numbers = #tpu.dot_dimension_numbers<[1], [0], [0], [1], [0, 0, 1, 1], [], []>} : vector<32x128xf32>, vector<128x128xf32>, vector<32x128xf32> -> vector<32x128xf32>
      %15 = vector.broadcast %13 : vector<1x128xf32> to vector<32x128xf32>
      %16 = arith.addf %14, %15 : vector<32x128xf32>
      %cst_11 = arith.constant 5.000000e-01 : f32
      %17 = vector.broadcast %cst_11 : f32 to vector<32x128xf32>
      %18 = arith.mulf %17, %16 : vector<32x128xf32>
      %cst_12 = arith.constant 0.707106769 : f32
      %19 = vector.broadcast %cst_12 : f32 to vector<32x128xf32>
      %20 = arith.mulf %16, %19 : vector<32x128xf32>
      %21 = math.erf %20 : vector<32x128xf32>
      %cst_13 = arith.constant 1.000000e+00 : f32
      %22 = vector.broadcast %cst_13 : f32 to vector<32x128xf32>
      %23 = arith.addf %22, %21 : vector<32x128xf32>
      %24 = arith.mulf %18, %23 : vector<32x128xf32>
      %c0_14 = arith.constant 0 : index
      %c0_15 = arith.constant 0 : index
      %c0_16 = arith.constant 0 : index
      %25 = vector.load %arg7[%c0_14, %c0_15, %c0_16] : memref<1x128x128xf32, #tpu.memory_space<vmem>>, vector<1x128x128xf32>
      %26 = vector.shape_cast %25 : vector<1x128x128xf32> to vector<128x128xf32>
      %c0_17 = arith.constant 0 : index
      %c0_18 = arith.constant 0 : index
      %c0_19 = arith.constant 0 : index
      %27 = vector.load %arg8[%c0_17, %c0_18, %c0_19] : memref<1x1x128xf32, #tpu.memory_space<vmem>>, vector<1x1x128xf32>
      %28 = vector.shape_cast %27 : vector<1x1x128xf32> to vector<1x128xf32>
      %cst_20 = arith.constant dense<0.000000e+00> : vector<32x128xf32>
      %29 = tpu.matmul %24, %26, %cst_20 {dimension_numbers = #tpu.dot_dimension_numbers<[1], [0], [0], [1], [0, 0, 1, 1], [], []>} : vector<32x128xf32>, vector<128x128xf32>, vector<32x128xf32> -> vector<32x128xf32>
      %30 = vector.broadcast %28 : vector<1x128xf32> to vector<32x128xf32>
      %31 = arith.addf %29, %30 : vector<32x128xf32>
      %c0_21 = arith.constant 0 : index
      %c0_22 = arith.constant 0 : index
      %c0_23 = arith.constant 0 : index
      %32 = vector.load %arg9[%c0_21, %c0_22, %c0_23] : memref<1x128x32xf32, #tpu.memory_space<vmem>>, vector<1x128x32xf32>
      %33 = vector.shape_cast %32 : vector<1x128x32xf32> to vector<128x32xf32>
      %c0_24 = arith.constant 0 : index
      %c0_25 = arith.constant 0 : index
      %c0_26 = arith.constant 0 : index
      %34 = vector.load %arg10[%c0_24, %c0_25, %c0_26] : memref<1x1x32xf32, #tpu.memory_space<vmem>>, vector<1x1x32xf32>
      %35 = vector.shape_cast %34 : vector<1x1x32xf32> to vector<1x32xf32>
      %cst_27 = arith.constant dense<0.000000e+00> : vector<32x32xf32>
      %36 = tpu.matmul %31, %33, %cst_27 {dimension_numbers = #tpu.dot_dimension_numbers<[1], [0], [0], [1], [0, 0, 1, 1], [], []>} : vector<32x128xf32>, vector<128x32xf32>, vector<32x32xf32> -> vector<32x32xf32>
      %37 = vector.broadcast %35 : vector<1x32xf32> to vector<32x32xf32>
      %38 = arith.addf %36, %37 : vector<32x32xf32>
      %cst_28 = arith.constant 5.000000e-01 : f32
      %39 = vector.broadcast %cst_28 : f32 to vector<32x32xf32>
      %40 = arith.mulf %39, %38 : vector<32x32xf32>
      %cst_29 = arith.constant 0.707106769 : f32
      %41 = vector.broadcast %cst_29 : f32 to vector<32x32xf32>
      %42 = arith.mulf %38, %41 : vector<32x32xf32>
      %43 = math.erf %42 : vector<32x32xf32>
      %cst_30 = arith.constant 1.000000e+00 : f32
      %44 = vector.broadcast %cst_30 : f32 to vector<32x32xf32>
      %45 = arith.addf %44, %43 : vector<32x32xf32>
      %46 = arith.mulf %40, %45 : vector<32x32xf32>
      %c0_31 = arith.constant 0 : index
      %c0_32 = arith.constant 0 : index
      %c0_33 = arith.constant 0 : index
      %47 = vector.load %arg11[%c0_31, %c0_32, %c0_33] : memref<1x32x32xf32, #tpu.memory_space<vmem>>, vector<1x32x32xf32>
      %48 = vector.shape_cast %47 : vector<1x32x32xf32> to vector<32x32xf32>
      %c0_34 = arith.constant 0 : index
      %c0_35 = arith.constant 0 : index
      %c0_36 = arith.constant 0 : index
      %49 = vector.load %arg12[%c0_34, %c0_35, %c0_36] : memref<1x1x32xf32, #tpu.memory_space<vmem>>, vector<1x1x32xf32>
      %50 = vector.shape_cast %49 : vector<1x1x32xf32> to vector<1x32xf32>
      %cst_37 = arith.constant dense<0.000000e+00> : vector<32x32xf32>
      %51 = tpu.matmul %46, %48, %cst_37 {dimension_numbers = #tpu.dot_dimension_numbers<[1], [0], [0], [1], [0, 0, 1, 1], [], []>} : vector<32x32xf32>, vector<32x32xf32>, vector<32x32xf32> -> vector<32x32xf32>
      %52 = vector.broadcast %50 : vector<1x32xf32> to vector<32x32xf32>
      %53 = arith.addf %51, %52 : vector<32x32xf32>
      %54 = arith.addf %7, %53 : vector<32x32xf32>
      %c0_38 = arith.constant 0 : index
      %c0_39 = arith.constant 0 : index
      %c0_40 = arith.constant 0 : index
      %55 = vector.load %arg13[%c0_38, %c0_39, %c0_40] : memref<1x32x32xf32, #tpu.memory_space<vmem>>, vector<1x32x32xf32>
      %56 = vector.shape_cast %55 : vector<1x32x32xf32> to vector<32x32xf32>
      %c0_41 = arith.constant 0 : index
      %c0_42 = arith.constant 0 : index
      %c0_43 = arith.constant 0 : index
      %57 = vector.load %arg14[%c0_41, %c0_42, %c0_43] : memref<1x1x32xf32, #tpu.memory_space<vmem>>, vector<1x1x32xf32>
      %58 = vector.shape_cast %57 : vector<1x1x32xf32> to vector<1x32xf32>
      %cst_44 = arith.constant dense<0.000000e+00> : vector<32x32xf32>
      %59 = tpu.matmul %54, %56, %cst_44 {dimension_numbers = #tpu.dot_dimension_numbers<[1], [0], [0], [1], [0, 0, 1, 1], [], []>} : vector<32x32xf32>, vector<32x32xf32>, vector<32x32xf32> -> vector<32x32xf32>
      %60 = vector.broadcast %58 : vector<1x32xf32> to vector<32x32xf32>
      %61 = arith.addf %59, %60 : vector<32x32xf32>
      %cst_45 = arith.constant 5.000000e-01 : f32
      %62 = vector.broadcast %cst_45 : f32 to vector<32x32xf32>
      %63 = arith.mulf %62, %61 : vector<32x32xf32>
      %cst_46 = arith.constant 0.707106769 : f32
      %64 = vector.broadcast %cst_46 : f32 to vector<32x32xf32>
      %65 = arith.mulf %61, %64 : vector<32x32xf32>
      %66 = math.erf %65 : vector<32x32xf32>
      %cst_47 = arith.constant 1.000000e+00 : f32
      %67 = vector.broadcast %cst_47 : f32 to vector<32x32xf32>
      %68 = arith.addf %67, %66 : vector<32x32xf32>
      %69 = arith.mulf %63, %68 : vector<32x32xf32>
      %c0_48 = arith.constant 0 : index
      %c0_49 = arith.constant 0 : index
      %c0_50 = arith.constant 0 : index
      %70 = vector.load %arg15[%c0_48, %c0_49, %c0_50] : memref<1x32x128xf32, #tpu.memory_space<vmem>>, vector<1x32x128xf32>
      %71 = vector.shape_cast %70 : vector<1x32x128xf32> to vector<32x128xf32>
      %c0_51 = arith.constant 0 : index
      %c0_52 = arith.constant 0 : index
      %c0_53 = arith.constant 0 : index
      %72 = vector.load %arg16[%c0_51, %c0_52, %c0_53] : memref<1x1x128xf32, #tpu.memory_space<vmem>>, vector<1x1x128xf32>
      %73 = vector.shape_cast %72 : vector<1x1x128xf32> to vector<1x128xf32>
      %cst_54 = arith.constant dense<0.000000e+00> : vector<32x128xf32>
      %74 = tpu.matmul %69, %71, %cst_54 {dimension_numbers = #tpu.dot_dimension_numbers<[1], [0], [0], [1], [0, 0, 1, 1], [], []>} : vector<32x32xf32>, vector<32x128xf32>, vector<32x128xf32> -> vector<32x128xf32>
      %75 = vector.broadcast %73 : vector<1x128xf32> to vector<32x128xf32>
      %76 = arith.addf %74, %75 : vector<32x128xf32>
      %77 = arith.addf %31, %76 : vector<32x128xf32>
      %c0_55 = arith.constant 0 : index
      %c0_56 = arith.constant 0 : index
      %c0_57 = arith.constant 0 : index
      %78 = vector.load %arg17[%c0_55, %c0_56, %c0_57] : memref<1x32x32xf32, #tpu.memory_space<vmem>>, vector<1x32x32xf32>
      %79 = vector.shape_cast %78 : vector<1x32x32xf32> to vector<32x32xf32>
      %80 = vector.shape_cast %54 : vector<32x32xf32> to vector<1x32x32xf32>
      tpu.vector_store %arg17[%c0_55, %c0_56, %c0_57], %80 {strides = array<i32>} : memref<1x32x32xf32, #tpu.memory_space<vmem>>, vector<1x32x32xf32>,
      %c0_58 = arith.constant 0 : index
      %c0_59 = arith.constant 0 : index
      %c0_60 = arith.constant 0 : index
      %81 = vector.load %arg18[%c0_58, %c0_59, %c0_60] : memref<1x32x128xf32, #tpu.memory_space<vmem>>, vector<1x32x128xf32>
      %82 = vector.shape_cast %81 : vector<1x32x128xf32> to vector<32x128xf32>
      %83 = vector.shape_cast %77 : vector<32x128xf32> to vector<1x32x128xf32>
      tpu.vector_store %arg18[%c0_58, %c0_59, %c0_60], %83 {strides = array<i32>} : memref<1x32x128xf32, #tpu.memory_space<vmem>>, vector<1x32x128xf32>,
    } else {
    }
    return
  }
  func.func @transform_0(%arg0: i32, %arg1: i32, %arg2: memref<4xi32, #tpu.memory_space<smem>>) -> (i32, i32, i32) {
    %c0_i32 = arith.constant 0 : i32
    %c0_i32_0 = arith.constant 0 : i32
    return %arg0, %arg1, %c0_i32 : i32, i32, i32
  }
  func.func @transform_1(%arg0: i32, %arg1: i32, %arg2: memref<4xi32, #tpu.memory_space<smem>>) -> (i32, i32, i32) {
    %c0_i32 = arith.constant 0 : i32
    %c0_i32_0 = arith.constant 0 : i32
    return %arg0, %arg1, %c0_i32 : i32, i32, i32
  }
  func.func @transform_2(%arg0: i32, %arg1: i32, %arg2: memref<4xi32, #tpu.memory_space<smem>>) -> (i32, i32, i32) {
    %c0_i32 = arith.constant 0 : i32
    %c0_i32_0 = arith.constant 0 : i32
    %c0_i32_1 = arith.constant 0 : i32
    return %arg0, %c0_i32, %c0_i32_0 : i32, i32, i32
  }
  func.func @transform_3(%arg0: i32, %arg1: i32, %arg2: memref<4xi32, #tpu.memory_space<smem>>) -> (i32, i32, i32) {
    %c0_i32 = arith.constant 0 : i32
    %c0_i32_0 = arith.constant 0 : i32
    %c0_i32_1 = arith.constant 0 : i32
    return %arg0, %c0_i32, %c0_i32_0 : i32, i32, i32
  }
  func.func @transform_4(%arg0: i32, %arg1: i32, %arg2: memref<4xi32, #tpu.memory_space<smem>>) -> (i32, i32, i32) {
    %c0_i32 = arith.constant 0 : i32
    %c0_i32_0 = arith.constant 0 : i32
    %c0_i32_1 = arith.constant 0 : i32
    return %arg0, %c0_i32, %c0_i32_0 : i32, i32, i32
  }
  func.func @transform_5(%arg0: i32, %arg1: i32, %arg2: memref<4xi32, #tpu.memory_space<smem>>) -> (i32, i32, i32) {
    %c0_i32 = arith.constant 0 : i32
    %c0_i32_0 = arith.constant 0 : i32
    %c0_i32_1 = arith.constant 0 : i32
    return %arg0, %c0_i32, %c0_i32_0 : i32, i32, i32
  }
  func.func @transform_6(%arg0: i32, %arg1: i32, %arg2: memref<4xi32, #tpu.memory_space<smem>>) -> (i32, i32, i32) {
    %c0_i32 = arith.constant 0 : i32
    %c0_i32_0 = arith.constant 0 : i32
    %c0_i32_1 = arith.constant 0 : i32
    return %arg0, %c0_i32, %c0_i32_0 : i32, i32, i32
  }
  func.func @transform_7(%arg0: i32, %arg1: i32, %arg2: memref<4xi32, #tpu.memory_space<smem>>) -> (i32, i32, i32) {
    %c0_i32 = arith.constant 0 : i32
    %c0_i32_0 = arith.constant 0 : i32
    %c0_i32_1 = arith.constant 0 : i32
    return %arg0, %c0_i32, %c0_i32_0 : i32, i32, i32
  }
  func.func @transform_8(%arg0: i32, %arg1: i32, %arg2: memref<4xi32, #tpu.memory_space<smem>>) -> (i32, i32, i32) {
    %c0_i32 = arith.constant 0 : i32
    %c0_i32_0 = arith.constant 0 : i32
    %c0_i32_1 = arith.constant 0 : i32
    return %arg0, %c0_i32, %c0_i32_0 : i32, i32, i32
  }
  func.func @transform_9(%arg0: i32, %arg1: i32, %arg2: memref<4xi32, #tpu.memory_space<smem>>) -> (i32, i32, i32) {
    %c0_i32 = arith.constant 0 : i32
    %c0_i32_0 = arith.constant 0 : i32
    %c0_i32_1 = arith.constant 0 : i32
    return %arg0, %c0_i32, %c0_i32_0 : i32, i32, i32
  }
  func.func @transform_10(%arg0: i32, %arg1: i32, %arg2: memref<4xi32, #tpu.memory_space<smem>>) -> (i32, i32, i32) {
    %c0_i32 = arith.constant 0 : i32
    %c0_i32_0 = arith.constant 0 : i32
    %c0_i32_1 = arith.constant 0 : i32
    return %arg0, %c0_i32, %c0_i32_0 : i32, i32, i32
  }
  func.func @transform_11(%arg0: i32, %arg1: i32, %arg2: memref<4xi32, #tpu.memory_space<smem>>) -> (i32, i32, i32) {
    %c0_i32 = arith.constant 0 : i32
    %c0_i32_0 = arith.constant 0 : i32
    %c0_i32_1 = arith.constant 0 : i32
    return %arg0, %c0_i32, %c0_i32_0 : i32, i32, i32
  }
  func.func @transform_12(%arg0: i32, %arg1: i32, %arg2: memref<4xi32, #tpu.memory_space<smem>>) -> (i32, i32, i32) {
    %c0_i32 = arith.constant 0 : i32
    %c0_i32_0 = arith.constant 0 : i32
    %c0_i32_1 = arith.constant 0 : i32
    return %arg0, %c0_i32, %c0_i32_0 : i32, i32, i32
  }
  func.func @transform_13(%arg0: i32, %arg1: i32, %arg2: memref<4xi32, #tpu.memory_space<smem>>) -> (i32, i32, i32) {
    %c0_i32 = arith.constant 0 : i32
    %c0_i32_0 = arith.constant 0 : i32
    %c0_i32_1 = arith.constant 0 : i32
    return %arg0, %c0_i32, %c0_i32_0 : i32, i32, i32
  }
  func.func @transform_14(%arg0: i32, %arg1: i32, %arg2: memref<4xi32, #tpu.memory_space<smem>>) -> (i32, i32, i32) {
    %c0_i32 = arith.constant 0 : i32
    %c0_i32_0 = arith.constant 0 : i32
    return %arg0, %arg1, %c0_i32 : i32, i32, i32
  }
  func.func @transform_15(%arg0: i32, %arg1: i32, %arg2: memref<4xi32, #tpu.memory_space<smem>>) -> (i32, i32, i32) {
    %c0_i32 = arith.constant 0 : i32
    %c0_i32_0 = arith.constant 0 : i32
    return %arg0, %arg1, %c0_i32 : i32, i32, i32
  }
}

</mosaic_0001>

<llo_original>
// kernel: tpu_custom_call.1
$region0: #{tpu_custom_call.1}
  #allocation0 [shape = 'u32[]', space=smem, size = 0x4, offset = 0x4, fixed_abs, tag = 'smem constant byte address 0x4 - core index']
  #allocation1 [shape = 'u32[72,128]{1,0:T(1,128)}', space=vmem, size = 0x9000, scoped, tag = 'internal scratch']
  #allocation2 [shape = 's32[1]{0}', space=sflag, size = 0x4, scoped, tag = 'scoped memory for tpu_custom_call.1']
  #allocation3 [shape = 'u8[512]{0}', space=smem, size = 0x200, scoped, tag = 'prefetched SMEM operand 0']
  %s0 = inlined_call_operand.vmem [shape: s32[4], index: 0, kind: input, shape index: {}]
  %s1 = inlined_call_operand.vmem [shape: f32[4,32,32], index: 1, kind: input, shape index: {}]
  %s2 = inlined_call_operand.hbm [shape: f32[4,32,128], index: 2, kind: input, shape index: {}]
  %s3 = inlined_call_operand.vmem [shape: f32[4,128,128], index: 3, kind: input, shape index: {}]
  %s4 = inlined_call_operand.hbm [shape: f32[4,1,128], index: 4, kind: input, shape index: {}]
  %s5 = inlined_call_operand.hbm [shape: f32[4,128,128], index: 5, kind: input, shape index: {}]
  %s6 = inlined_call_operand.hbm [shape: f32[4,1,128], index: 6, kind: input, shape index: {}]
  %s7 = inlined_call_operand.vmem [shape: f32[4,128,32], index: 7, kind: input, shape index: {}]
  %s8 = inlined_call_operand.vmem [shape: f32[4,1,32], index: 8, kind: input, shape index: {}]
  %s9 = inlined_call_operand.hbm [shape: f32[4,32,32], index: 9, kind: input, shape index: {}]
  %s10 = inlined_call_operand.hbm [shape: f32[4,1,32], index: 10, kind: input, shape index: {}]
  %s11 = inlined_call_operand.hbm [shape: f32[4,32,32], index: 11, kind: input, shape index: {}]
  %s12 = inlined_call_operand.hbm [shape: f32[4,1,32], index: 12, kind: input, shape index: {}]
  %s13 = inlined_call_operand.hbm [shape: f32[4,32,128], index: 13, kind: input, shape index: {}]
  %s14 = inlined_call_operand.vmem [shape: f32[4,1,128], index: 14, kind: input, shape index: {}]
  %s15 = inlined_call_operand.hbm [shape: f32[4,32,32], index: 15, kind: output, shape index: {0}]
  %s16 = inlined_call_operand.hbm [shape: f32[4,32,128], index: 16, kind: output, shape index: {1}]
  %17 = xla_tuple %s15, %s16
  %s18 = sld [smem:[#allocation0]]
  $region137: #{tpu_custom_call.1} parent=0
    _
  %s20 = ssub.s32 1, %s18
  %s21 = scalar_select 0, %s20, %s18
  %s23 = sshll.u32 %s0, 4
  %s24 = int_to_ptr.vmem [resolvable:$true] %s23
  %26 = dma.vmem_to_smem %s24, 16, [#allocation3], [#allocation2]
  %28 = dma.done [#allocation2], 16
  %29 = sfence
  $region1: #{tpu_custom_call.1} parent=0
    #allocation4 [shape = 'u8[32768]{0}', space=vmem, size = 0x8000, scoped, tag = 'input window, operand 2']
    #allocation5 [shape = 's32[2]{0}', space=sflag, size = 0x8, scoped, tag = 'scoped memory for tpu_custom_call.1']
    #allocation6 [shape = 's32[2]{0}', space=sflag, size = 0x8, scoped, tag = 'scoped memory for tpu_custom_call.1']
    #allocation7 [shape = 'u8[512]{0}', space=vmem, size = 0x400, scoped, tag = 'input window, operand 4, single buffered']
    #allocation8 [shape = 's32[1]{0}', space=sflag, size = 0x4, scoped, tag = 'scoped memory for tpu_custom_call.1']
    #allocation9 [shape = 'u8[65536]{0}', space=vmem, size = 0x10000, scoped, tag = 'input window, operand 5, single buffered']
    #allocation10 [shape = 'u8[512]{0}', space=vmem, size = 0x400, scoped, tag = 'input window, operand 6, single buffered']
    #allocation11 [shape = 's32[1]{0}', space=sflag, size = 0x4, scoped, tag = 'scoped memory for tpu_custom_call.1']
    #allocation12 [shape = 'u8[16384]{0}', space=vmem, size = 0x4000, scoped, tag = 'input window, operand 9, single buffered']
    #allocation13 [shape = 'u8[512]{0}', space=vmem, size = 0x400, scoped, tag = 'input window, operand 10, single buffered']
    #allocation14 [shape = 's32[1]{0}', space=sflag, size = 0x4, scoped, tag = 'scoped memory for tpu_custom_call.1']
    #allocation15 [shape = 'u8[16384]{0}', space=vmem, size = 0x4000, scoped, tag = 'input window, operand 11, single buffered']
    #allocation16 [shape = 'u8[512]{0}', space=vmem, size = 0x400, scoped, tag = 'input window, operand 12, single buffered']
    #allocation17 [shape = 's32[1]{0}', space=sflag, size = 0x4, scoped, tag = 'scoped memory for tpu_custom_call.1']
    #allocation18 [shape = 'u8[16384]{0}', space=vmem, size = 0x4000, scoped, tag = 'input window, operand 13, single buffered']
    #allocation19 [shape = 'u8[32768]{0}', space=vmem, size = 0x8000, scoped, tag = 'output window, operand 0']
    #allocation20 [shape = 'u8[32768]{0}', space=vmem, size = 0x8000, scoped, tag = 'output window, operand 1']
    #allocation21 [shape = 's32[2]{0}', space=sflag, size = 0x8, scoped, tag = 'scoped memory for tpu_custom_call.1']
    %30 = vsyncpa [#allocation5], 0
    %s31 = scalar_lea.sflag [#allocation5], 1
    %32 = vsyncpa %s31, 0
    %33 = vsyncpa [#allocation8], 0
    %34 = vsyncpa [#allocation11], 0
    %35 = vsyncpa [#allocation14], 0
    %36 = vsyncpa [#allocation17], 0
    %37 = vsyncpa [#allocation6], 0
    %s38 = scalar_lea.sflag [#allocation6], 1
    %39 = vsyncpa %s38, 0
    %40 = vsyncpa [#allocation21], 0
    %s41 = scalar_lea.sflag [#allocation21], 1
    %42 = vsyncpa %s41, 0
    loop: start=0, step=1, limit=6
    $region2: #{tpu_custom_call.1} parent=1 // loop_pre_header
      _
    $region3: #{tpu_custom_call.1} parent=1 // loop_header
      %s44 = sphi 0, %s48
      %p45 = scmp.ge.s32.totalorder %s44, 6
      %s51 = sphi 0, %s63
      %s52 = sphi 0, %s59
      %s53 = sphi 0, %s51
      %s54 = sphi 0, %s52
      %s55 = sphi 0, %s53
      %s56 = sphi 0, %s54
      %s68 = sphi 0, %s70
      %s71 = sphi 0, %s68
      %s72 = sphi 0, %s71
      %s88 = sphi 0, %s72
      %s96 = sphi 0, %s98
      %s99 = sphi 0, %s96
      %s100 = sphi 0, %s99
      %s116 = sphi 0, %s100
      %s122 = sphi 0, %s124
      %s125 = sphi 0, %s122
      %s126 = sphi 0, %s125
      %s142 = sphi 0, %s126
      %s148 = sphi 0, %s150
      %s151 = sphi 0, %s148
      %s152 = sphi 0, %s151
      %s168 = sphi 0, %s152
      %s174 = sphi 0, %s176
      %s177 = sphi 0, %s174
      %s178 = sphi 0, %s177
      %s194 = sphi 0, %s178
      %s200 = sphi 0, %s202
      %s203 = sphi 0, %s200
      %s204 = sphi 0, %s203
      %s220 = sphi 0, %s204
      %s226 = sphi 0, %s228
      %s229 = sphi 0, %s226
      %s230 = sphi 0, %s229
      %s246 = sphi 0, %s230
      %s252 = sphi 0, %s254
      %s255 = sphi 0, %s252
      %s256 = sphi 0, %s255
      %s272 = sphi 0, %s256
      %s278 = sphi 0, %s280
      %s281 = sphi 0, %s278
      %s282 = sphi 0, %s281
      %s298 = sphi 0, %s282
      %s304 = sphi 0, %s306
      %s307 = sphi 0, %s304
      %s308 = sphi 0, %s307
      %s324 = sphi 0, %s308
      %s330 = sphi 0, %s332
      %s333 = sphi 0, %s330
      %s334 = sphi 0, %s333
      %s350 = sphi 0, %s334
      %s356 = sphi 0, %s358
      %s359 = sphi 0, %s356
      %s360 = sphi 0, %s359
      %s376 = sphi 0, %s360
      %s382 = sphi 0, %s384
      %s385 = sphi 0, %s382
      %s386 = sphi 0, %s385
      %s402 = sphi 0, %s386
      %s408 = sphi 0, %s410
      %s411 = sphi 0, %s408
      %s412 = sphi 0, %s411
      %s428 = sphi 0, %s412
      %s436 = sphi 0, %s438
      %s439 = sphi 0, %s436
      %s440 = sphi 0, %s439
      %s456 = sphi 0, %s440
      %s464 = sphi 0, %s466
      %s467 = sphi 0, %s464
      %s468 = sphi 0, %s467
      %s484 = sphi 0, %s468
    $region4: #{tpu_custom_call.1} parent=1 // loop_header_branch
      %47 = sbr.rel (%p45) target = $region8
    $region5: #{tpu_custom_call.1} parent=1 // loop_body
      %s49 = ssub.s32 %s44, 1
      %s50 = ssub.s32 %s44, 2
      %s57 = sadd.s32 1, %s52
      %p58 = scmp.ge.s32.totalorder %s57, 1
      %s59 = scalar_select %p58, 0, %s57
      %s60 = sadd.s32 1, %s51
      %s61 = scalar_select %p58, %s60, %s51
      %p62 = scmp.ge.s32.totalorder %s61, 4
      %s63 = scalar_select %p62, 0, %s61
      %s64 = ssub.s32 %s51, %s63
      %s65 = ssub.s32 %s52, %s59
      %s66 = sor.u32 %s64, %s65
      %p67 = scmp.eq.s32.totalorder %s66, 0
      %s69 = sadd.s32 %s68, 1
      %s70 = scalar_select %p67, %s68, %s69
      %p73 = pneg %p67
      %p74 = scmp.eq.s32.totalorder %s44, 3
      %p75 = por %p73, %p74
      %p76 = scmp.ne.s32.totalorder %s68, %s71
      %p77 = scmp.eq.s32.totalorder %s44, 0
      %p78 = por %p76, %p77
      %p79 = scmp.ne.s32.totalorder %s68, %s71
      %p80 = scmp.eq.s32.totalorder %s49, 3
      %p81 = por %p79, %p80
      %p82 = scmp.ne.s32.totalorder %s71, %s72
      %p83 = scmp.eq.s32.totalorder %s49, 0
      %p84 = por %p82, %p83
      %p85 = scmp.ne.s32.totalorder %s71, %s72
      %p86 = scmp.eq.s32.totalorder %s50, 3
      %p87 = por %p85, %p86
      %p89 = scmp.ne.s32.totalorder %s72, %s88
      %p90 = scmp.eq.s32.totalorder %s50, 0
      %p91 = por %p89, %p90
      %s92 = ssub.s32 %s51, %s63
      %s93 = ssub.s32 %s52, %s59
      %s94 = sor.u32 %s92, %s93
      %p95 = scmp.eq.s32.totalorder %s94, 0
      %s97 = sadd.s32 %s96, 1
      %s98 = scalar_select %p95, %s96, %s97
      %p101 = pneg %p95
      %p102 = scmp.eq.s32.totalorder %s44, 3
      %p103 = por %p101, %p102
      %p104 = scmp.ne.s32.totalorder %s96, %s99
      %p105 = scmp.eq.s32.totalorder %s44, 0
      %p106 = por %p104, %p105
      %p107 = scmp.ne.s32.totalorder %s96, %s99
      %p108 = scmp.eq.s32.totalorder %s49, 3
      %p109 = por %p107, %p108
      %p110 = scmp.ne.s32.totalorder %s99, %s100
      %p111 = scmp.eq.s32.totalorder %s49, 0
      %p112 = por %p110, %p111
      %p113 = scmp.ne.s32.totalorder %s99, %s100
      %p114 = scmp.eq.s32.totalorder %s50, 3
      %p115 = por %p113, %p114
      %p117 = scmp.ne.s32.totalorder %s100, %s116
      %p118 = scmp.eq.s32.totalorder %s50, 0
      %p119 = por %p117, %p118
      %s120 = ssub.s32 %s51, %s63
      %p121 = scmp.eq.s32.totalorder %s120, 0
      %s123 = sadd.s32 %s122, 1
      %s124 = scalar_select %p121, %s122, %s123
      %p127 = pneg %p121
      %p128 = scmp.eq.s32.totalorder %s44, 3
      %p129 = por %p127, %p128
      %p130 = scmp.ne.s32.totalorder %s122, %s125
      %p131 = scmp.eq.s32.totalorder %s44, 0
      %p132 = por %p130, %p131
      %p133 = scmp.ne.s32.totalorder %s122, %s125
      %p134 = scmp.eq.s32.totalorder %s49, 3
      %p135 = por %p133, %p134
      %p136 = scmp.ne.s32.totalorder %s125, %s126
      %p137 = scmp.eq.s32.totalorder %s49, 0
      %p138 = por %p136, %p137
      %p139 = scmp.ne.s32.totalorder %s125, %s126
      %p140 = scmp.eq.s32.totalorder %s50, 3
      %p141 = por %p139, %p140
      %p143 = scmp.ne.s32.totalorder %s126, %s142
      %p144 = scmp.eq.s32.totalorder %s50, 0
      %p145 = por %p143, %p144
      %s146 = ssub.s32 %s51, %s63
      %p147 = scmp.eq.s32.totalorder %s146, 0
      %s149 = sadd.s32 %s148, 1
      %s150 = scalar_select %p147, %s148, %s149
      %p153 = pneg %p147
      %p154 = scmp.eq.s32.totalorder %s44, 3
      %p155 = por %p153, %p154
      %p156 = scmp.ne.s32.totalorder %s148, %s151
      %p157 = scmp.eq.s32.totalorder %s44, 0
      %p158 = por %p156, %p157
      %p159 = scmp.ne.s32.totalorder %s148, %s151
      %p160 = scmp.eq.s32.totalorder %s49, 3
      %p161 = por %p159, %p160
      %p162 = scmp.ne.s32.totalorder %s151, %s152
      %p163 = scmp.eq.s32.totalorder %s49, 0
      %p164 = por %p162, %p163
      %p165 = scmp.ne.s32.totalorder %s151, %s152
      %p166 = scmp.eq.s32.totalorder %s50, 3
      %p167 = por %p165, %p166
      %p169 = scmp.ne.s32.totalorder %s152, %s168
      %p170 = scmp.eq.s32.totalorder %s50, 0
      %p171 = por %p169, %p170
      %s172 = ssub.s32 %s51, %s63
      %p173 = scmp.eq.s32.totalorder %s172, 0
      %s175 = sadd.s32 %s174, 1
      %s176 = scalar_select %p173, %s174, %s175
      %p179 = pneg %p173
      %p180 = scmp.eq.s32.totalorder %s44, 3
      %p181 = por %p179, %p180
      %p182 = scmp.ne.s32.totalorder %s174, %s177
      %p183 = scmp.eq.s32.totalorder %s44, 0
      %p184 = por %p182, %p183
      %p185 = scmp.ne.s32.totalorder %s174, %s177
      %p186 = scmp.eq.s32.totalorder %s49, 3
      %p187 = por %p185, %p186
      %p188 = scmp.ne.s32.totalorder %s177, %s178
      %p189 = scmp.eq.s32.totalorder %s49, 0
      %p190 = por %p188, %p189
      %p191 = scmp.ne.s32.totalorder %s177, %s178
      %p192 = scmp.eq.s32.totalorder %s50, 3
      %p193 = por %p191, %p192
      %p195 = scmp.ne.s32.totalorder %s178, %s194
      %p196 = scmp.eq.s32.totalorder %s50, 0
      %p197 = por %p195, %p196
      %s198 = ssub.s32 %s51, %s63
      %p199 = scmp.eq.s32.totalorder %s198, 0
      %s201 = sadd.s32 %s200, 1
      %s202 = scalar_select %p199, %s200, %s201
      %p205 = pneg %p199
      %p206 = scmp.eq.s32.totalorder %s44, 3
      %p207 = por %p205, %p206
      %p208 = scmp.ne.s32.totalorder %s200, %s203
      %p209 = scmp.eq.s32.totalorder %s44, 0
      %p210 = por %p208, %p209
      %p211 = scmp.ne.s32.totalorder %s200, %s203
      %p212 = scmp.eq.s32.totalorder %s49, 3
      %p213 = por %p211, %p212
      %p214 = scmp.ne.s32.totalorder %s203, %s204
      %p215 = scmp.eq.s32.totalorder %s49, 0
      %p216 = por %p214, %p215
      %p217 = scmp.ne.s32.totalorder %s203, %s204
      %p218 = scmp.eq.s32.totalorder %s50, 3
      %p219 = por %p217, %p218
      %p221 = scmp.ne.s32.totalorder %s204, %s220
      %p222 = scmp.eq.s32.totalorder %s50, 0
      %p223 = por %p221, %p222
      %s224 = ssub.s32 %s51, %s63
      %p225 = scmp.eq.s32.totalorder %s224, 0
      %s227 = sadd.s32 %s226, 1
      %s228 = scalar_select %p225, %s226, %s227
      %p231 = pneg %p225
      %p232 = scmp.eq.s32.totalorder %s44, 3
      %p233 = por %p231, %p232
      %p234 = scmp.ne.s32.totalorder %s226, %s229
      %p235 = scmp.eq.s32.totalorder %s44, 0
      %p236 = por %p234, %p235
      %p237 = scmp.ne.s32.totalorder %s226, %s229
      %p238 = scmp.eq.s32.totalorder %s49, 3
      %p239 = por %p237, %p238
      %p240 = scmp.ne.s32.totalorder %s229, %s230
      %p241 = scmp.eq.s32.totalorder %s49, 0
      %p242 = por %p240, %p241
      %p243 = scmp.ne.s32.totalorder %s229, %s230
      %p244 = scmp.eq.s32.totalorder %s50, 3
      %p245 = por %p243, %p244
      %p247 = scmp.ne.s32.totalorder %s230, %s246
      %p248 = scmp.eq.s32.totalorder %s50, 0
      %p249 = por %p247, %p248
      %s250 = ssub.s32 %s51, %s63
      %p251 = scmp.eq.s32.totalorder %s250, 0
      %s253 = sadd.s32 %s252, 1
      %s254 = scalar_select %p251, %s252, %s253
      %p257 = pneg %p251
      %p258 = scmp.eq.s32.totalorder %s44, 3
      %p259 = por %p257, %p258
      %p260 = scmp.ne.s32.totalorder %s252, %s255
      %p261 = scmp.eq.s32.totalorder %s44, 0
      %p262 = por %p260, %p261
      %p263 = scmp.ne.s32.totalorder %s252, %s255
      %p264 = scmp.eq.s32.totalorder %s49, 3
      %p265 = por %p263, %p264
      %p266 = scmp.ne.s32.totalorder %s255, %s256
      %p267 = scmp.eq.s32.totalorder %s49, 0
      %p268 = por %p266, %p267
      %p269 = scmp.ne.s32.totalorder %s255, %s256
      %p270 = scmp.eq.s32.totalorder %s50, 3
      %p271 = por %p269, %p270
      %p273 = scmp.ne.s32.totalorder %s256, %s272
      %p274 = scmp.eq.s32.totalorder %s50, 0
      %p275 = por %p273, %p274
      %s276 = ssub.s32 %s51, %s63
      %p277 = scmp.eq.s32.totalorder %s276, 0
      %s279 = sadd.s32 %s278, 1
      %s280 = scalar_select %p277, %s278, %s279
      %p283 = pneg %p277
      %p284 = scmp.eq.s32.totalorder %s44, 3
      %p285 = por %p283, %p284
      %p286 = scmp.ne.s32.totalorder %s278, %s281
      %p287 = scmp.eq.s32.totalorder %s44, 0
      %p288 = por %p286, %p287
      %p289 = scmp.ne.s32.totalorder %s278, %s281
      %p290 = scmp.eq.s32.totalorder %s49, 3
      %p291 = por %p289, %p290
      %p292 = scmp.ne.s32.totalorder %s281, %s282
      %p293 = scmp.eq.s32.totalorder %s49, 0
      %p294 = por %p292, %p293
      %p295 = scmp.ne.s32.totalorder %s281, %s282
      %p296 = scmp.eq.s32.totalorder %s50, 3
      %p297 = por %p295, %p296
      %p299 = scmp.ne.s32.totalorder %s282, %s298
      %p300 = scmp.eq.s32.totalorder %s50, 0
      %p301 = por %p299, %p300
      %s302 = ssub.s32 %s51, %s63
      %p303 = scmp.eq.s32.totalorder %s302, 0
      %s305 = sadd.s32 %s304, 1
      %s306 = scalar_select %p303, %s304, %s305
      %p309 = pneg %p303
      %p310 = scmp.eq.s32.totalorder %s44, 3
      %p311 = por %p309, %p310
      %p312 = scmp.ne.s32.totalorder %s304, %s307
      %p313 = scmp.eq.s32.totalorder %s44, 0
      %p314 = por %p312, %p313
      %p315 = scmp.ne.s32.totalorder %s304, %s307
      %p316 = scmp.eq.s32.totalorder %s49, 3
      %p317 = por %p315, %p316
      %p318 = scmp.ne.s32.totalorder %s307, %s308
      %p319 = scmp.eq.s32.totalorder %s49, 0
      %p320 = por %p318, %p319
      %p321 = scmp.ne.s32.totalorder %s307, %s308
      %p322 = scmp.eq.s32.totalorder %s50, 3
      %p323 = por %p321, %p322
      %p325 = scmp.ne.s32.totalorder %s308, %s324
      %p326 = scmp.eq.s32.totalorder %s50, 0
      %p327 = por %p325, %p326
      %s328 = ssub.s32 %s51, %s63
      %p329 = scmp.eq.s32.totalorder %s328, 0
      %s331 = sadd.s32 %s330, 1
      %s332 = scalar_select %p329, %s330, %s331
      %p335 = pneg %p329
      %p336 = scmp.eq.s32.totalorder %s44, 3
      %p337 = por %p335, %p336
      %p338 = scmp.ne.s32.totalorder %s330, %s333
      %p339 = scmp.eq.s32.totalorder %s44, 0
      %p340 = por %p338, %p339
      %p341 = scmp.ne.s32.totalorder %s330, %s333
      %p342 = scmp.eq.s32.totalorder %s49, 3
      %p343 = por %p341, %p342
      %p344 = scmp.ne.s32.totalorder %s333, %s334
      %p345 = scmp.eq.s32.totalorder %s49, 0
      %p346 = por %p344, %p345
      %p347 = scmp.ne.s32.totalorder %s333, %s334
      %p348 = scmp.eq.s32.totalorder %s50, 3
      %p349 = por %p347, %p348
      %p351 = scmp.ne.s32.totalorder %s334, %s350
      %p352 = scmp.eq.s32.totalorder %s50, 0
      %p353 = por %p351, %p352
      %s354 = ssub.s32 %s51, %s63
      %p355 = scmp.eq.s32.totalorder %s354, 0
      %s357 = sadd.s32 %s356, 1
      %s358 = scalar_select %p355, %s356, %s357
      %p361 = pneg %p355
      %p362 = scmp.eq.s32.totalorder %s44, 3
      %p363 = por %p361, %p362
      %p364 = scmp.ne.s32.totalorder %s356, %s359
      %p365 = scmp.eq.s32.totalorder %s44, 0
      %p366 = por %p364, %p365
      %p367 = scmp.ne.s32.totalorder %s356, %s359
      %p368 = scmp.eq.s32.totalorder %s49, 3
      %p369 = por %p367, %p368
      %p370 = scmp.ne.s32.totalorder %s359, %s360
      %p371 = scmp.eq.s32.totalorder %s49, 0
      %p372 = por %p370, %p371
      %p373 = scmp.ne.s32.totalorder %s359, %s360
      %p374 = scmp.eq.s32.totalorder %s50, 3
      %p375 = por %p373, %p374
      %p377 = scmp.ne.s32.totalorder %s360, %s376
      %p378 = scmp.eq.s32.totalorder %s50, 0
      %p379 = por %p377, %p378
      %s380 = ssub.s32 %s51, %s63
      %p381 = scmp.eq.s32.totalorder %s380, 0
      %s383 = sadd.s32 %s382, 1
      %s384 = scalar_select %p381, %s382, %s383
      %p387 = pneg %p381
      %p388 = scmp.eq.s32.totalorder %s44, 3
      %p389 = por %p387, %p388
      %p390 = scmp.ne.s32.totalorder %s382, %s385
      %p391 = scmp.eq.s32.totalorder %s44, 0
      %p392 = por %p390, %p391
      %p393 = scmp.ne.s32.totalorder %s382, %s385
      %p394 = scmp.eq.s32.totalorder %s49, 3
      %p395 = por %p393, %p394
      %p396 = scmp.ne.s32.totalorder %s385, %s386
      %p397 = scmp.eq.s32.totalorder %s49, 0
      %p398 = por %p396, %p397
      %p399 = scmp.ne.s32.totalorder %s385, %s386
      %p400 = scmp.eq.s32.totalorder %s50, 3
      %p401 = por %p399, %p400
      %p403 = scmp.ne.s32.totalorder %s386, %s402
      %p404 = scmp.eq.s32.totalorder %s50, 0
      %p405 = por %p403, %p404
      %s406 = ssub.s32 %s51, %s63
      %p407 = scmp.eq.s32.totalorder %s406, 0
      %s409 = sadd.s32 %s408, 1
      %s410 = scalar_select %p407, %s408, %s409
      %p413 = pneg %p407
      %p414 = scmp.eq.s32.totalorder %s44, 3
      %p415 = por %p413, %p414
      %p416 = scmp.ne.s32.totalorder %s408, %s411
      %p417 = scmp.eq.s32.totalorder %s44, 0
      %p418 = por %p416, %p417
      %p419 = scmp.ne.s32.totalorder %s408, %s411
      %p420 = scmp.eq.s32.totalorder %s49, 3
      %p421 = por %p419, %p420
      %p422 = scmp.ne.s32.totalorder %s411, %s412
      %p423 = scmp.eq.s32.totalorder %s49, 0
      %p424 = por %p422, %p423
      %p425 = scmp.ne.s32.totalorder %s411, %s412
      %p426 = scmp.eq.s32.totalorder %s50, 3
      %p427 = por %p425, %p426
      %p429 = scmp.ne.s32.totalorder %s412, %s428
      %p430 = scmp.eq.s32.totalorder %s50, 0
      %p431 = por %p429, %p430
      %s432 = ssub.s32 %s51, %s63
      %s433 = ssub.s32 %s52, %s59
      %s434 = sor.u32 %s432, %s433
      %p435 = scmp.eq.s32.totalorder %s434, 0
      %s437 = sadd.s32 %s436, 1
      %s438 = scalar_select %p435, %s436, %s437
      %p441 = pneg %p435
      %p442 = scmp.eq.s32.totalorder %s44, 3
      %p443 = por %p441, %p442
      %p444 = scmp.ne.s32.totalorder %s436, %s439
      %p445 = scmp.eq.s32.totalorder %s44, 0
      %p446 = por %p444, %p445
      %p447 = scmp.ne.s32.totalorder %s436, %s439
      %p448 = scmp.eq.s32.totalorder %s49, 3
      %p449 = por %p447, %p448
      %p450 = scmp.ne.s32.totalorder %s439, %s440
      %p451 = scmp.eq.s32.totalorder %s49, 0
      %p452 = por %p450, %p451
      %p453 = scmp.ne.s32.totalorder %s439, %s440
      %p454 = scmp.eq.s32.totalorder %s50, 3
      %p455 = por %p453, %p454
      %p457 = scmp.ne.s32.totalorder %s440, %s456
      %p458 = scmp.eq.s32.totalorder %s50, 0
      %p459 = por %p457, %p458
      %s460 = ssub.s32 %s51, %s63
      %s461 = ssub.s32 %s52, %s59
      %s462 = sor.u32 %s460, %s461
      %p463 = scmp.eq.s32.totalorder %s462, 0
      %s465 = sadd.s32 %s464, 1
      %s466 = scalar_select %p463, %s464, %s465
      %p469 = pneg %p463
      %p470 = scmp.eq.s32.totalorder %s44, 3
      %p471 = por %p469, %p470
      %p472 = scmp.ne.s32.totalorder %s464, %s467
      %p473 = scmp.eq.s32.totalorder %s44, 0
      %p474 = por %p472, %p473
      %p475 = scmp.ne.s32.totalorder %s464, %s467
      %p476 = scmp.eq.s32.totalorder %s49, 3
      %p477 = por %p475, %p476
      %p478 = scmp.ne.s32.totalorder %s467, %s468
      %p479 = scmp.eq.s32.totalorder %s49, 0
      %p480 = por %p478, %p479
      %p481 = scmp.ne.s32.totalorder %s467, %s468
      %p482 = scmp.eq.s32.totalorder %s50, 3
      %p483 = por %p481, %p482
      %p485 = scmp.ne.s32.totalorder %s468, %s484
      %p486 = scmp.eq.s32.totalorder %s50, 0
      %p487 = por %p485, %p486
      %p488 = scmp.le.s32.totalorder 1, %s44
      %p489 = scmp.lt.s32.totalorder %s44, 5
      %p490 = pnand %p488, %p489
      %p491 = pneg %p490
      // Predicated region
      $region9: #{tpu_custom_call.1} parent=5 // pred_check
        _
      $region10: #{tpu_custom_call.1} parent=5 // pred_check_branch
        %493 = sbr.rel (%p490) target = $region12
      $region11: #{tpu_custom_call.1} parent=5 // pred_region
        %s494 = ssub.s32 %s44, 1
        // Predicated region
        $region13: #{tpu_custom_call.1} parent=11 // pred_check
          %p495 = pneg %p138
        $region14: #{tpu_custom_call.1} parent=11 // pred_check_branch
          %497 = sbr.rel (%p495) target = $region16
        $region15: #{tpu_custom_call.1} parent=11 // pred_region
          %p498 = scmp.lt.s32.totalorder %s53, 3
          %s499 = scalar_select %p498, %s53, 3
          %s500 = smul.addr %s499, 16
          %s501 = smul.addr %s500, 8
          %s502 = scalar_lea.vmem %s3, %s501
        $region16: #{tpu_custom_call.1} parent=11 // pred_fallthru
          _
        // Predicated region
        $region17: #{tpu_custom_call.1} parent=11 // pred_check
          %p503 = pneg %p164
        $region18: #{tpu_custom_call.1} parent=11 // pred_check_branch
          %505 = sbr.rel (%p503) target = $region20
        $region19: #{tpu_custom_call.1} parent=11 // pred_region
          %507 = vsyncadd [#allocation8], 0
          %s508 = scalar_lea.hbm %s4, %s53
          %s510 = sshll.u32 %s508, 4
          %s511 = int_to_ptr.hbm [resolvable:$true] %s510
          %s512 = sshll.u32 [#allocation7], 4
          %s513 = int_to_ptr.vmem [resolvable:$true] %s512
          %515 = dma.hbm_to_vmem [thread:$0]  %s511, 16, %s513, [#allocation8]
        $region20: #{tpu_custom_call.1} parent=11 // pred_fallthru
          _
        // Predicated region
        $region21: #{tpu_custom_call.1} parent=11 // pred_check
          %p516 = pneg %p190
        $region22: #{tpu_custom_call.1} parent=11 // pred_check_branch
          %518 = sbr.rel (%p516) target = $region24
        $region23: #{tpu_custom_call.1} parent=11 // pred_region
          %520 = vsyncadd [#allocation8], 0
          %s521 = smul.addr %s53, 16
          %s522 = smul.addr %s521, 8
          %s523 = scalar_lea.hbm %s5, %s522
          %s524 = sshll.u32 %s523, 4
          %s525 = int_to_ptr.hbm [resolvable:$true] %s524
          %s526 = sshll.u32 [#allocation9], 4
          %s527 = int_to_ptr.vmem [resolvable:$true] %s526
          %532 = dma.hbm_to_vmem [thread:$0]  %s525, 2048, %s527, [#allocation8], 128, 128, 8
        $region24: #{tpu_custom_call.1} parent=11 // pred_fallthru
          _
        // Predicated region
        $region25: #{tpu_custom_call.1} parent=11 // pred_check
          %p533 = pneg %p216
        $region26: #{tpu_custom_call.1} parent=11 // pred_check_branch
          %535 = sbr.rel (%p533) target = $region28
        $region27: #{tpu_custom_call.1} parent=11 // pred_region
          %537 = vsyncadd [#allocation11], 0
          %s538 = scalar_lea.hbm %s6, %s53
          %s540 = sshll.u32 %s538, 4
          %s541 = int_to_ptr.hbm [resolvable:$true] %s540
          %s542 = sshll.u32 [#allocation10], 4
          %s543 = int_to_ptr.vmem [resolvable:$true] %s542
          %545 = dma.hbm_to_vmem [thread:$0]  %s541, 16, %s543, [#allocation11]
        $region28: #{tpu_custom_call.1} parent=11 // pred_fallthru
          _
        // Predicated region
        $region29: #{tpu_custom_call.1} parent=11 // pred_check
          %p546 = pneg %p242
        $region30: #{tpu_custom_call.1} parent=11 // pred_check_branch
          %548 = sbr.rel (%p546) target = $region32
        $region31: #{tpu_custom_call.1} parent=11 // pred_region
          %p549 = scmp.lt.s32.totalorder %s53, 3
          %s550 = scalar_select %p549, %s53, 3
          %s551 = smul.addr %s550, 16
          %s552 = smul.addr %s551, 8
          %s553 = scalar_lea.vmem %s7, %s552
        $region32: #{tpu_custom_call.1} parent=11 // pred_fallthru
          _
        // Predicated region
        $region33: #{tpu_custom_call.1} parent=11 // pred_check
          %p554 = pneg %p268
        $region34: #{tpu_custom_call.1} parent=11 // pred_check_branch
          %556 = sbr.rel (%p554) target = $region36
        $region35: #{tpu_custom_call.1} parent=11 // pred_region
          %p557 = scmp.lt.s32.totalorder %s53, 3
          %s558 = scalar_select %p557, %s53, 3
          %s559 = scalar_lea.vmem %s8, %s558
        $region36: #{tpu_custom_call.1} parent=11 // pred_fallthru
          _
        // Predicated region
        $region37: #{tpu_custom_call.1} parent=11 // pred_check
          %p560 = pneg %p294
        $region38: #{tpu_custom_call.1} parent=11 // pred_check_branch
          %562 = sbr.rel (%p560) target = $region40
        $region39: #{tpu_custom_call.1} parent=11 // pred_region
          %564 = vsyncadd [#allocation11], 0
          %s565 = smul.addr %s53, 4
          %s566 = smul.addr %s565, 8
          %s567 = scalar_lea.hbm %s9, %s566
          %s568 = sshll.u32 %s567, 4
          %s569 = int_to_ptr.hbm [resolvable:$true] %s568
          %s570 = sshll.u32 [#allocation12], 4
          %s571 = int_to_ptr.vmem [resolvable:$true] %s570
          %576 = dma.hbm_to_vmem [thread:$0]  %s569, 512, %s571, [#allocation11], 128, 128, 8
        $region40: #{tpu_custom_call.1} parent=11 // pred_fallthru
          _
        // Predicated region
        $region41: #{tpu_custom_call.1} parent=11 // pred_check
          %p577 = pneg %p320
        $region42: #{tpu_custom_call.1} parent=11 // pred_check_branch
          %579 = sbr.rel (%p577) target = $region44
        $region43: #{tpu_custom_call.1} parent=11 // pred_region
          %581 = vsyncadd [#allocation14], 0
          %s582 = scalar_lea.hbm %s10, %s53
          %s584 = sshll.u32 %s582, 4
          %s585 = int_to_ptr.hbm [resolvable:$true] %s584
          %s586 = sshll.u32 [#allocation13], 4
          %s587 = int_to_ptr.vmem [resolvable:$true] %s586
          %589 = dma.hbm_to_vmem [thread:$0]  %s585, 16, %s587, [#allocation14]
        $region44: #{tpu_custom_call.1} parent=11 // pred_fallthru
          _
        // Predicated region
        $region45: #{tpu_custom_call.1} parent=11 // pred_check
          %p590 = pneg %p346
        $region46: #{tpu_custom_call.1} parent=11 // pred_check_branch
          %592 = sbr.rel (%p590) target = $region48
        $region47: #{tpu_custom_call.1} parent=11 // pred_region
          %594 = vsyncadd [#allocation14], 0
          %s595 = smul.addr %s53, 4
          %s596 = smul.addr %s595, 8
          %s597 = scalar_lea.hbm %s11, %s596
          %s598 = sshll.u32 %s597, 4
          %s599 = int_to_ptr.hbm [resolvable:$true] %s598
          %s600 = sshll.u32 [#allocation15], 4
          %s601 = int_to_ptr.vmem [resolvable:$true] %s600
          %606 = dma.hbm_to_vmem [thread:$0]  %s599, 512, %s601, [#allocation14], 128, 128, 8
        $region48: #{tpu_custom_call.1} parent=11 // pred_fallthru
          _
        // Predicated region
        $region49: #{tpu_custom_call.1} parent=11 // pred_check
          %p607 = pneg %p372
        $region50: #{tpu_custom_call.1} parent=11 // pred_check_branch
          %609 = sbr.rel (%p607) target = $region52
        $region51: #{tpu_custom_call.1} parent=11 // pred_region
          %611 = vsyncadd [#allocation17], 0
          %s612 = scalar_lea.hbm %s12, %s53
          %s614 = sshll.u32 %s612, 4
          %s615 = int_to_ptr.hbm [resolvable:$true] %s614
          %s616 = sshll.u32 [#allocation16], 4
          %s617 = int_to_ptr.vmem [resolvable:$true] %s616
          %619 = dma.hbm_to_vmem [thread:$0]  %s615, 16, %s617, [#allocation17]
        $region52: #{tpu_custom_call.1} parent=11 // pred_fallthru
          _
        // Predicated region
        $region53: #{tpu_custom_call.1} parent=11 // pred_check
          %p620 = pneg %p398
        $region54: #{tpu_custom_call.1} parent=11 // pred_check_branch
          %622 = sbr.rel (%p620) target = $region56
        $region55: #{tpu_custom_call.1} parent=11 // pred_region
          %624 = vsyncadd [#allocation17], 0
          %s625 = smul.addr %s53, 4
          %s626 = smul.addr %s625, 8
          %s627 = scalar_lea.hbm %s13, %s626
          %s628 = sshll.u32 %s627, 4
          %s629 = int_to_ptr.hbm [resolvable:$true] %s628
          %s630 = sshll.u32 [#allocation18], 4
          %s631 = int_to_ptr.vmem [resolvable:$true] %s630
          %636 = dma.hbm_to_vmem [thread:$0]  %s629, 512, %s631, [#allocation17], 128, 128, 8
        $region56: #{tpu_custom_call.1} parent=11 // pred_fallthru
          _
        // Predicated region
        $region57: #{tpu_custom_call.1} parent=11 // pred_check
          %p637 = pneg %p424
        $region58: #{tpu_custom_call.1} parent=11 // pred_check_branch
          %639 = sbr.rel (%p637) target = $region60
        $region59: #{tpu_custom_call.1} parent=11 // pred_region
          %p640 = scmp.lt.s32.totalorder %s53, 3
          %s641 = scalar_select %p640, %s53, 3
          %s642 = scalar_lea.vmem %s14, %s641
        $region60: #{tpu_custom_call.1} parent=11 // pred_fallthru
          _
      $region12: #{tpu_custom_call.1} parent=5 // pred_fallthru
        _
      %p643 = scmp.lt.s32.totalorder %s44, 4
      // Predicated region
      $region61: #{tpu_custom_call.1} parent=5 // pred_check
        %p644 = pneg %p643
      $region62: #{tpu_custom_call.1} parent=5 // pred_check_branch
        %646 = sbr.rel (%p644) target = $region64
      $region63: #{tpu_custom_call.1} parent=5 // pred_region
        // Predicated region
        $region65: #{tpu_custom_call.1} parent=63 // pred_check
          %p647 = pneg %p78
        $region66: #{tpu_custom_call.1} parent=63 // pred_check_branch
          %649 = sbr.rel (%p647) target = $region68
        $region67: #{tpu_custom_call.1} parent=63 // pred_region
          %s650 = smul.u32 4, %s52
          %p651 = scmp.lt.s32.totalorder %s51, 3
          %s652 = scalar_select %p651, %s51, 3
          %p653 = scmp.lt.s32.totalorder %s650, 3
          %s654 = scalar_select %p653, %s650, 3
          %s655 = smul.addr %s652, 4
          %s656 = sadd.s32 %s654, %s655
          %s657 = smul.addr %s656, 8
          %s658 = scalar_lea.vmem %s1, %s657
          %s659 = smul.u32 4, %s52
        $region68: #{tpu_custom_call.1} parent=63 // pred_fallthru
          _
        // Predicated region
        $region69: #{tpu_custom_call.1} parent=63 // pred_check
          %p660 = pneg %p106
        $region70: #{tpu_custom_call.1} parent=63 // pred_check_branch
          %662 = sbr.rel (%p660) target = $region72
        $region71: #{tpu_custom_call.1} parent=63 // pred_region
          %s663 = sand.u32 %s96, 1
          %s664 = scalar_lea.sflag [#allocation5], %s663
          %s665 = sand.u32 %s96, 1
          %s666 = smul.addr %s665, 32
          %s667 = scalar_lea.vmem [#allocation4], %s666
          %s668 = smul.u32 4, %s52
          %670 = vsyncadd %s664, 0
          %s671 = smul.addr %s51, 4
          %s672 = sadd.s32 %s668, %s671
          %s673 = smul.addr %s672, 8
          %s674 = scalar_lea.hbm %s2, %s673
          %s675 = sshll.u32 %s674, 4
          %s676 = int_to_ptr.hbm [resolvable:$true] %s675
          %s677 = sshll.u32 %s667, 4
          %s678 = int_to_ptr.vmem [resolvable:$true] %s677
          %683 = dma.hbm_to_vmem [thread:$0]  %s676, 512, %s678, %s664, 128, 128, 8
        $region72: #{tpu_custom_call.1} parent=63 // pred_fallthru
          _
      $region64: #{tpu_custom_call.1} parent=5 // pred_fallthru
        _
      %p684 = scmp.le.s32.totalorder 1, %s44
      %p685 = scmp.lt.s32.totalorder %s44, 5
      %p686 = pnand %p684, %p685
      %p687 = pneg %p686
      // Predicated region
      $region73: #{tpu_custom_call.1} parent=5 // pred_check
        _
      $region74: #{tpu_custom_call.1} parent=5 // pred_check_branch
        %689 = sbr.rel (%p686) target = $region76
      $region75: #{tpu_custom_call.1} parent=5 // pred_region
        %s690 = ssub.s32 %s44, 1
        %s691 = sand.u32 %s99, 1
        %s692 = scalar_lea.sflag [#allocation5], %s691
        %s693 = sand.u32 %s99, 1
        %s694 = smul.addr %s693, 32
        %s695 = scalar_lea.vmem [#allocation4], %s694
        // Predicated region
        $region77: #{tpu_custom_call.1} parent=75 // pred_check
          %p696 = pneg %p112
        $region78: #{tpu_custom_call.1} parent=75 // pred_check_branch
          %698 = sbr.rel (%p696) target = $region80
        $region79: #{tpu_custom_call.1} parent=75 // pred_region
          %700 = dma.done %s692, 512
        $region80: #{tpu_custom_call.1} parent=75 // pred_fallthru
          _
        // Predicated region
        $region81: #{tpu_custom_call.1} parent=75 // pred_check
          %p701 = pneg %p164
        $region82: #{tpu_custom_call.1} parent=75 // pred_check_branch
          %703 = sbr.rel (%p701) target = $region84
        $region83: #{tpu_custom_call.1} parent=75 // pred_region
          %705 = dma.done [#allocation8], 16
        $region84: #{tpu_custom_call.1} parent=75 // pred_fallthru
          _
        // Predicated region
        $region85: #{tpu_custom_call.1} parent=75 // pred_check
          %p706 = pneg %p190
        $region86: #{tpu_custom_call.1} parent=75 // pred_check_branch
          %708 = sbr.rel (%p706) target = $region88
        $region87: #{tpu_custom_call.1} parent=75 // pred_region
          %710 = dma.done [#allocation8], 2048
        $region88: #{tpu_custom_call.1} parent=75 // pred_fallthru
          _
        // Predicated region
        $region89: #{tpu_custom_call.1} parent=75 // pred_check
          %p711 = pneg %p216
        $region90: #{tpu_custom_call.1} parent=75 // pred_check_branch
          %713 = sbr.rel (%p711) target = $region92
        $region91: #{tpu_custom_call.1} parent=75 // pred_region
          %715 = dma.done [#allocation11], 16
        $region92: #{tpu_custom_call.1} parent=75 // pred_fallthru
          _
        // Predicated region
        $region93: #{tpu_custom_call.1} parent=75 // pred_check
          %p716 = pneg %p294
        $region94: #{tpu_custom_call.1} parent=75 // pred_check_branch
          %718 = sbr.rel (%p716) target = $region96
        $region95: #{tpu_custom_call.1} parent=75 // pred_region
          %720 = dma.done [#allocation11], 512
        $region96: #{tpu_custom_call.1} parent=75 // pred_fallthru
          _
        // Predicated region
        $region97: #{tpu_custom_call.1} parent=75 // pred_check
          %p721 = pneg %p320
        $region98: #{tpu_custom_call.1} parent=75 // pred_check_branch
          %723 = sbr.rel (%p721) target = $region100
        $region99: #{tpu_custom_call.1} parent=75 // pred_region
          %725 = dma.done [#allocation14], 16
        $region100: #{tpu_custom_call.1} parent=75 // pred_fallthru
          _
        // Predicated region
        $region101: #{tpu_custom_call.1} parent=75 // pred_check
          %p726 = pneg %p346
        $region102: #{tpu_custom_call.1} parent=75 // pred_check_branch
          %728 = sbr.rel (%p726) target = $region104
        $region103: #{tpu_custom_call.1} parent=75 // pred_region
          %730 = dma.done [#allocation14], 512
        $region104: #{tpu_custom_call.1} parent=75 // pred_fallthru
          _
        // Predicated region
        $region105: #{tpu_custom_call.1} parent=75 // pred_check
          %p731 = pneg %p372
        $region106: #{tpu_custom_call.1} parent=75 // pred_check_branch
          %733 = sbr.rel (%p731) target = $region108
        $region107: #{tpu_custom_call.1} parent=75 // pred_region
          %735 = dma.done [#allocation17], 16
        $region108: #{tpu_custom_call.1} parent=75 // pred_fallthru
          _
        // Predicated region
        $region109: #{tpu_custom_call.1} parent=75 // pred_check
          %p736 = pneg %p398
        $region110: #{tpu_custom_call.1} parent=75 // pred_check_branch
          %738 = sbr.rel (%p736) target = $region112
        $region111: #{tpu_custom_call.1} parent=75 // pred_region
          %740 = dma.done [#allocation17], 512
        $region112: #{tpu_custom_call.1} parent=75 // pred_fallthru
          _
        %s741 = smul.u32 4, %s54
        %p742 = scmp.lt.s32.totalorder %s53, 3
        %s743 = scalar_select %p742, %s53, 3
        %p744 = scmp.lt.s32.totalorder %s741, 3
        %s745 = scalar_select %p744, %s741, 3
        %s746 = smul.addr %s743, 4
        %s747 = sadd.s32 %s745, %s746
        %s748 = smul.addr %s747, 8
        %s749 = scalar_lea.vmem %s1, %s748
        %p750 = pneg %p84
        %p751 = pneg %p81
        %s752 = sand.u32 %s99, 1
        %s753 = scalar_lea.sflag [#allocation5], %s752
        %s754 = sand.u32 %s99, 1
        %s755 = smul.addr %s754, 32
        %s756 = scalar_lea.vmem [#allocation4], %s755
        %p757 = pneg %p112
        %p758 = pneg %p109
        %p759 = scmp.lt.s32.totalorder %s53, 3
        %s760 = scalar_select %p759, %s53, 3
        %s761 = smul.addr %s760, 16
        %s762 = smul.addr %s761, 8
        %s763 = scalar_lea.vmem %s3, %s762
        %p764 = pneg %p138
        %p765 = pneg %p135
        %p766 = pneg %p164
        %p767 = pneg %p161
        %p768 = pneg %p190
        %p769 = pneg %p187
        %p770 = pneg %p216
        %p771 = pneg %p213
        %p772 = scmp.lt.s32.totalorder %s53, 3
        %s773 = scalar_select %p772, %s53, 3
        %s774 = smul.addr %s773, 16
        %s775 = smul.addr %s774, 8
        %s776 = scalar_lea.vmem %s7, %s775
        %p777 = pneg %p242
        %p778 = pneg %p239
        %p779 = scmp.lt.s32.totalorder %s53, 3
        %s780 = scalar_select %p779, %s53, 3
        %s781 = scalar_lea.vmem %s8, %s780
        %p782 = pneg %p268
        %p783 = pneg %p265
        %p784 = pneg %p294
        %p785 = pneg %p291
        %p786 = pneg %p320
        %p787 = pneg %p317
        %p788 = pneg %p346
        %p789 = pneg %p343
        %p790 = pneg %p372
        %p791 = pneg %p369
        %p792 = pneg %p398
        %p793 = pneg %p395
        %p794 = scmp.lt.s32.totalorder %s53, 3
        %s795 = scalar_select %p794, %s53, 3
        %s796 = scalar_lea.vmem %s14, %s795
        %p797 = pneg %p424
        %p798 = pneg %p421
        %p799 = pneg %p452
        %p800 = pneg %p449
        %s801 = sand.u32 %s439, 1
        %s802 = scalar_lea.sflag [#allocation6], %s801
        %s803 = sand.u32 %s439, 1
        %s804 = smul.addr %s803, 32
        %s805 = scalar_lea.vmem [#allocation19], %s804
        %p806 = pneg %p480
        %p807 = pneg %p477
        %s808 = sand.u32 %s467, 1
        %s809 = scalar_lea.sflag [#allocation21], %s808
        %s810 = sand.u32 %s467, 1
        %s811 = smul.addr %s810, 32
        %s812 = scalar_lea.vmem [#allocation20], %s811
        %s813 = smul.u32 4, %s54
        %p814 = scmp.lt.s32.totalorder %s53, 3
        %s815 = scalar_select %p814, %s53, 3
        %p816 = scmp.lt.s32.totalorder %s813, 3
        %s817 = scalar_select %p816, %s813, 3
        %s818 = smul.addr %s815, 4
        %s819 = sadd.s32 %s817, %s818
        %s820 = smul.addr %s819, 8
        %s821 = scalar_lea.vmem %s1, %s820
        %s822 = smul.u32 4, %s54
        %s823 = smul.u32 4, %s54
        %p824 = scmp.lt.s32.totalorder %s53, 3
        %s825 = scalar_select %p824, %s53, 3
        %s826 = smul.addr %s825, 16
        %s827 = smul.addr %s826, 8
        %s828 = scalar_lea.vmem %s3, %s827
        %p829 = scmp.lt.s32.totalorder %s53, 3
        %s830 = scalar_select %p829, %s53, 3
        %s831 = smul.addr %s830, 16
        %s832 = smul.addr %s831, 8
        %s833 = scalar_lea.vmem %s7, %s832
        %p834 = scmp.lt.s32.totalorder %s53, 3
        %s835 = scalar_select %p834, %s53, 3
        %s836 = scalar_lea.vmem %s8, %s835
        %p837 = scmp.lt.s32.totalorder %s53, 3
        %s838 = scalar_select %p837, %s53, 3
        %s839 = scalar_lea.vmem %s14, %s838
        %s840 = smul.u32 4, %s54
        %s841 = smul.u32 4, %s54
        %s842 = smul.u32 %s54, 32
        %s843 = sld [smem:[#allocation3 + %s53]]
        %p844 = scmp.lt.s32.totalorder %s842, %s843
        // Predicated region
        $region113: #{tpu_custom_call.1} parent=75 // pred_check
          %p845 = pneg %p844
        $region114: #{tpu_custom_call.1} parent=75 // pred_check_branch
          %847 = sbr.rel (%p845) target = $region116
        $region115: #{tpu_custom_call.1} parent=75 // pred_region
          %v848 = vld [vmem:[%s821] sm:$0xff]
          %v849 = vld [vmem:[%s821 + $0x8] sm:$0xff]
          %v850 = vld [vmem:[%s821 + $0x10] sm:$0xff]
          %v851 = vld [vmem:[%s821 + $0x18] sm:$0xff]
          %v852 = vld [vmem:[%s695] sm:$0xff]
          %v853 = vld [vmem:[%s695 + $0x8] sm:$0xff]
          %v854 = vld [vmem:[%s695 + $0x10] sm:$0xff]
          %v855 = vld [vmem:[%s695 + $0x18] sm:$0xff]
          %v856 = vld [vmem:[%s828] sm:$0xff]
          %v857 = vld [vmem:[%s828 + $0x8] sm:$0xff]
          %v858 = vld [vmem:[%s828 + $0x10] sm:$0xff]
          %v859 = vld [vmem:[%s828 + $0x18] sm:$0xff]
          %v860 = vld [vmem:[%s828 + $0x20] sm:$0xff]
          %v861 = vld [vmem:[%s828 + $0x28] sm:$0xff]
          %v862 = vld [vmem:[%s828 + $0x30] sm:$0xff]
          %v863 = vld [vmem:[%s828 + $0x38] sm:$0xff]
          %v864 = vld [vmem:[%s828 + $0x40] sm:$0xff]
          %v865 = vld [vmem:[%s828 + $0x48] sm:$0xff]
          %v866 = vld [vmem:[%s828 + $0x50] sm:$0xff]
          %v867 = vld [vmem:[%s828 + $0x58] sm:$0xff]
          %v868 = vld [vmem:[%s828 + $0x60] sm:$0xff]
          %v869 = vld [vmem:[%s828 + $0x68] sm:$0xff]
          %v870 = vld [vmem:[%s828 + $0x70] sm:$0xff]
          %v871 = vld [vmem:[%s828 + $0x78] sm:$0xff]
          %v872 = vld [vmem:[#allocation7] sm:$0x1]
          %v874 = vperm.slane %v872, 0
          %876 = vmatpush.msra.mxu0 %v871
          %877 = vmatpush.msra.mxu0 %v870
          %878 = vmatpush.msra.mxu0 %v869
          %879 = vmatpush.msra.mxu0 %v868
          %880 = vmatpush.msra.mxu0 %v867
          %881 = vmatpush.msra.mxu0 %v866
          %882 = vmatpush.msra.mxu0 %v865
          %883 = vmatpush.msra.mxu0 %v864
          %884 = vmatpush.msra.mxu0 %v863
          %885 = vmatpush.msra.mxu0 %v862
          %886 = vmatpush.msra.mxu0 %v861
          %887 = vmatpush.msra.mxu0 %v860
          %888 = vmatpush.msra.mxu0 %v859
          %889 = vmatpush.msra.mxu0 %v858
          %890 = vmatpush.msra.mxu0 %v857
          %891 = vmatpush.msra.mxu0 %v856
          %892 = vmatmul.f32.gmra.mxu0 %v852
          %v893 = vpop.f32.mrf.mxu0
          %v894 = vadd.f32 %v874, %v893
          %895 = vmatmul.f32.gmra.mxu0 %v853
          %v896 = vpop.f32.mrf.mxu0
          %v897 = vadd.f32 %v874, %v896
          %898 = vmatmul.f32.gmra.mxu0 %v854
          %v899 = vpop.f32.mrf.mxu0
          %v900 = vadd.f32 %v874, %v899
          %901 = vmatmul.f32.gmra.mxu0 %v855
          %v902 = vpop.f32.mrf.mxu0
          %v903 = vadd.f32 %v874, %v902
          %904 = vdwg.mxu0
          %v905 = vmul.f32 %v894, 0.5
          %v906 = vmul.f32 %v897, 0.5
          %v907 = vmul.f32 %v900, 0.5
          %v908 = vmul.f32 %v903, 0.5
          %v909 = vmul.f32 %v894, 0.70710677
          %v910 = vmul.f32 %v897, 0.70710677
          %v911 = vmul.f32 %v900, 0.70710677
          %v912 = vmul.f32 %v903, 0.70710677
          %v913 = vmul.f32 %v909, %v909
          %v914 = vmin.f32 16.0, %v913
          %v915 = vmul.f32 %v914, 2.1237322e-06
          %v916 = vadd.f32 %v915, 0.00028619796
          %v917 = vmul.f32 %v914, %v916
          %v918 = vadd.f32 %v917, 0.0036580483
          %v919 = vmul.f32 %v914, %v918
          %v920 = vadd.f32 %v919, 0.05243302
          %v921 = vmul.f32 %v914, %v920
          %v922 = vadd.f32 %v921, 0.18741608
          %v923 = vmul.f32 %v914, %v922
          %v924 = vadd.f32 %v923, 1.1283791
          %v925 = vmul.f32 %v909, %v924
          %v926 = vmul.f32 %v914, 3.8918573e-05
          %v927 = vadd.f32 %v926, 0.001143296
          %v928 = vmul.f32 %v914, %v927
          %v929 = vadd.f32 %v928, 0.014752088
          %v930 = vmul.f32 %v914, %v929
          %v931 = vadd.f32 %v930, 0.112945676
          %v932 = vmul.f32 %v914, %v931
          %v933 = vadd.f32 %v932, 0.4994258
          %v934 = vmul.f32 %v914, %v933
          %v935 = vadd.f32 %v934, 1.0
          %v936 = vrcp.pop %v935
          %v937 = vmul.f32 %v935, %v936
          %v938 = vsub.f32 1.0, %v937
          %v939 = vmul.f32 %v936, %v938
          %v940 = vadd.f32 %v936, %v939
          %vm941 = vweird.f32 %v935
          %vm942 = vweird.f32 %v936
          %vm943 = vmor %vm941, %vm942
          %v944 = vsel %vm943, %v936, %v940
          %v945 = vand.u32 2147483647, %v935
          %vm946 = vcmp.eq.f32.partialorder %v945, 8.507059e+37
          %v947 = vand.u32 %v935, 2147483648
          %v948 = vor.u32 1.1754944e-38, %v947
          %v949 = vsel %vm946, %v948, %v944
          %v950 = vmul.f32 %v925, %v949
          %v951 = vmin.f32 %v950, 1.0
          %v952 = vmax.f32 %v951, -1.0
          %v953 = vmul.f32 %v910, %v910
          %v954 = vmin.f32 16.0, %v953
          %v955 = vmul.f32 %v954, 2.1237322e-06
          %v956 = vadd.f32 %v955, 0.00028619796
          %v957 = vmul.f32 %v954, %v956
          %v958 = vadd.f32 %v957, 0.0036580483
          %v959 = vmul.f32 %v954, %v958
          %v960 = vadd.f32 %v959, 0.05243302
          %v961 = vmul.f32 %v954, %v960
          %v962 = vadd.f32 %v961, 0.18741608
          %v963 = vmul.f32 %v954, %v962
          %v964 = vadd.f32 %v963, 1.1283791
          %v965 = vmul.f32 %v910, %v964
          %v966 = vmul.f32 %v954, 3.8918573e-05
          %v967 = vadd.f32 %v966, 0.001143296
          %v968 = vmul.f32 %v954, %v967
          %v969 = vadd.f32 %v968, 0.014752088
          %v970 = vmul.f32 %v954, %v969
          %v971 = vadd.f32 %v970, 0.112945676
          %v972 = vmul.f32 %v954, %v971
          %v973 = vadd.f32 %v972, 0.4994258
          %v974 = vmul.f32 %v954, %v973
          %v975 = vadd.f32 %v974, 1.0
          %v976 = vrcp.pop %v975
          %v977 = vmul.f32 %v975, %v976
          %v978 = vsub.f32 1.0, %v977
          %v979 = vmul.f32 %v976, %v978
          %v980 = vadd.f32 %v976, %v979
          %vm981 = vweird.f32 %v975
          %vm982 = vweird.f32 %v976
          %vm983 = vmor %vm981, %vm982
          %v984 = vsel %vm983, %v976, %v980
          %v985 = vand.u32 2147483647, %v975
          %vm986 = vcmp.eq.f32.partialorder %v985, 8.507059e+37
          %v987 = vand.u32 %v975, 2147483648
          %v988 = vor.u32 1.1754944e-38, %v987
          %v989 = vsel %vm986, %v988, %v984
          %v990 = vmul.f32 %v965, %v989
          %v991 = vmin.f32 %v990, 1.0
          %v992 = vmax.f32 %v991, -1.0
          %v993 = vmul.f32 %v911, %v911
          %v994 = vmin.f32 16.0, %v993
          %v995 = vmul.f32 %v994, 2.1237322e-06
          %v996 = vadd.f32 %v995, 0.00028619796
          %v997 = vmul.f32 %v994, %v996
          %v998 = vadd.f32 %v997, 0.0036580483
          %v999 = vmul.f32 %v994, %v998
          %v1000 = vadd.f32 %v999, 0.05243302
          %v1001 = vmul.f32 %v994, %v1000
          %v1002 = vadd.f32 %v1001, 0.18741608
          %v1003 = vmul.f32 %v994, %v1002
          %v1004 = vadd.f32 %v1003, 1.1283791
          %v1005 = vmul.f32 %v911, %v1004
          %v1006 = vmul.f32 %v994, 3.8918573e-05
          %v1007 = vadd.f32 %v1006, 0.001143296
          %v1008 = vmul.f32 %v994, %v1007
          %v1009 = vadd.f32 %v1008, 0.014752088
          %v1010 = vmul.f32 %v994, %v1009
          %v1011 = vadd.f32 %v1010, 0.112945676
          %v1012 = vmul.f32 %v994, %v1011
          %v1013 = vadd.f32 %v1012, 0.4994258
          %v1014 = vmul.f32 %v994, %v1013
          %v1015 = vadd.f32 %v1014, 1.0
          %v1016 = vrcp.pop %v1015
          %v1017 = vmul.f32 %v1015, %v1016
          %v1018 = vsub.f32 1.0, %v1017
          %v1019 = vmul.f32 %v1016, %v1018
          %v1020 = vadd.f32 %v1016, %v1019
          %vm1021 = vweird.f32 %v1015
          %vm1022 = vweird.f32 %v1016
          %vm1023 = vmor %vm1021, %vm1022
          %v1024 = vsel %vm1023, %v1016, %v1020
          %v1025 = vand.u32 2147483647, %v1015
          %vm1026 = vcmp.eq.f32.partialorder %v1025, 8.507059e+37
          %v1027 = vand.u32 %v1015, 2147483648
          %v1028 = vor.u32 1.1754944e-38, %v1027
          %v1029 = vsel %vm1026, %v1028, %v1024
          %v1030 = vmul.f32 %v1005, %v1029
          %v1031 = vmin.f32 %v1030, 1.0
          %v1032 = vmax.f32 %v1031, -1.0
          %v1033 = vmul.f32 %v912, %v912
          %v1034 = vmin.f32 16.0, %v1033
          %v1035 = vmul.f32 %v1034, 2.1237322e-06
          %v1036 = vadd.f32 %v1035, 0.00028619796
          %v1037 = vmul.f32 %v1034, %v1036
          %v1038 = vadd.f32 %v1037, 0.0036580483
          %v1039 = vmul.f32 %v1034, %v1038
          %v1040 = vadd.f32 %v1039, 0.05243302
          %v1041 = vmul.f32 %v1034, %v1040
          %v1042 = vadd.f32 %v1041, 0.18741608
          %v1043 = vmul.f32 %v1034, %v1042
          %v1044 = vadd.f32 %v1043, 1.1283791
          %v1045 = vmul.f32 %v912, %v1044
          %v1046 = vmul.f32 %v1034, 3.8918573e-05
          %v1047 = vadd.f32 %v1046, 0.001143296
          %v1048 = vmul.f32 %v1034, %v1047
          %v1049 = vadd.f32 %v1048, 0.014752088
          %v1050 = vmul.f32 %v1034, %v1049
          %v1051 = vadd.f32 %v1050, 0.112945676
          %v1052 = vmul.f32 %v1034, %v1051
          %v1053 = vadd.f32 %v1052, 0.4994258
          %v1054 = vmul.f32 %v1034, %v1053
          %v1055 = vadd.f32 %v1054, 1.0
          %v1056 = vrcp.pop %v1055
          %v1057 = vmul.f32 %v1055, %v1056
          %v1058 = vsub.f32 1.0, %v1057
          %v1059 = vmul.f32 %v1056, %v1058
          %v1060 = vadd.f32 %v1056, %v1059
          %vm1061 = vweird.f32 %v1055
          %vm1062 = vweird.f32 %v1056
          %vm1063 = vmor %vm1061, %vm1062
          %v1064 = vsel %vm1063, %v1056, %v1060
          %v1065 = vand.u32 2147483647, %v1055
          %vm1066 = vcmp.eq.f32.partialorder %v1065, 8.507059e+37
          %v1067 = vand.u32 %v1055, 2147483648
          %v1068 = vor.u32 1.1754944e-38, %v1067
          %v1069 = vsel %vm1066, %v1068, %v1064
          %v1070 = vmul.f32 %v1045, %v1069
          %v1071 = vmin.f32 %v1070, 1.0
          %v1072 = vmax.f32 %v1071, -1.0
          %v1073 = vadd.f32 %v952, 1.0
          %v1074 = vadd.f32 %v992, 1.0
          %v1075 = vadd.f32 %v1032, 1.0
          %v1076 = vadd.f32 %v1072, 1.0
          %v1077 = vmul.f32 %v905, %v1073
          %v1078 = vmul.f32 %v906, %v1074
          %v1079 = vmul.f32 %v907, %v1075
          %v1080 = vmul.f32 %v908, %v1076
          %v1081 = vld [vmem:[#allocation9] sm:$0xff]
          %v1082 = vld [vmem:[#allocation9 + $0x8] sm:$0xff]
          %v1083 = vld [vmem:[#allocation9 + $0x10] sm:$0xff]
          %v1084 = vld [vmem:[#allocation9 + $0x18] sm:$0xff]
          %v1085 = vld [vmem:[#allocation9 + $0x20] sm:$0xff]
          %v1086 = vld [vmem:[#allocation9 + $0x28] sm:$0xff]
          %v1087 = vld [vmem:[#allocation9 + $0x30] sm:$0xff]
          %v1088 = vld [vmem:[#allocation9 + $0x38] sm:$0xff]
          %v1089 = vld [vmem:[#allocation9 + $0x40] sm:$0xff]
          %v1090 = vld [vmem:[#allocation9 + $0x48] sm:$0xff]
          %v1091 = vld [vmem:[#allocation9 + $0x50] sm:$0xff]
          %v1092 = vld [vmem:[#allocation9 + $0x58] sm:$0xff]
          %v1093 = vld [vmem:[#allocation9 + $0x60] sm:$0xff]
          %v1094 = vld [vmem:[#allocation9 + $0x68] sm:$0xff]
          %v1095 = vld [vmem:[#allocation9 + $0x70] sm:$0xff]
          %v1096 = vld [vmem:[#allocation9 + $0x78] sm:$0xff]
          %v1097 = vld [vmem:[#allocation10] sm:$0x1]
          %v1099 = vperm.slane %v1097, 0
          %1101 = vmatpush.msra.mxu0 %v1096
          %1102 = vmatpush.msra.mxu0 %v1095
          %1103 = vmatpush.msra.mxu0 %v1094
          %1104 = vmatpush.msra.mxu0 %v1093
          %1105 = vmatpush.msra.mxu0 %v1092
          %1106 = vmatpush.msra.mxu0 %v1091
          %1107 = vmatpush.msra.mxu0 %v1090
          %1108 = vmatpush.msra.mxu0 %v1089
          %1109 = vmatpush.msra.mxu0 %v1088
          %1110 = vmatpush.msra.mxu0 %v1087
          %1111 = vmatpush.msra.mxu0 %v1086
          %1112 = vmatpush.msra.mxu0 %v1085
          %1113 = vmatpush.msra.mxu0 %v1084
          %1114 = vmatpush.msra.mxu0 %v1083
          %1115 = vmatpush.msra.mxu0 %v1082
          %1116 = vmatpush.msra.mxu0 %v1081
          %1117 = vmatmul.f32.gmra.mxu0 %v1077
          %v1118 = vpop.f32.mrf.mxu0
          %v1119 = vadd.f32 %v1099, %v1118
          %1120 = vmatmul.f32.gmra.mxu0 %v1078
          %v1121 = vpop.f32.mrf.mxu0
          %v1122 = vadd.f32 %v1099, %v1121
          %1123 = vmatmul.f32.gmra.mxu0 %v1079
          %v1124 = vpop.f32.mrf.mxu0
          %v1125 = vadd.f32 %v1099, %v1124
          %1126 = vmatmul.f32.gmra.mxu0 %v1080
          %v1127 = vpop.f32.mrf.mxu0
          %v1128 = vadd.f32 %v1099, %v1127
          %1129 = vdwg.mxu0
          %v1130 = vld [vmem:[%s833] sm:$0xff]
          %v1131 = vld [vmem:[%s833 + $0x8] sm:$0xff]
          %v1132 = vld [vmem:[%s833 + $0x10] sm:$0xff]
          %v1133 = vld [vmem:[%s833 + $0x18] sm:$0xff]
          %v1134 = vld [vmem:[%s833 + $0x20] sm:$0xff]
          %v1135 = vld [vmem:[%s833 + $0x28] sm:$0xff]
          %v1136 = vld [vmem:[%s833 + $0x30] sm:$0xff]
          %v1137 = vld [vmem:[%s833 + $0x38] sm:$0xff]
          %v1138 = vld [vmem:[%s833 + $0x40] sm:$0xff]
          %v1139 = vld [vmem:[%s833 + $0x48] sm:$0xff]
          %v1140 = vld [vmem:[%s833 + $0x50] sm:$0xff]
          %v1141 = vld [vmem:[%s833 + $0x58] sm:$0xff]
          %v1142 = vld [vmem:[%s833 + $0x60] sm:$0xff]
          %v1143 = vld [vmem:[%s833 + $0x68] sm:$0xff]
          %v1144 = vld [vmem:[%s833 + $0x70] sm:$0xff]
          %v1145 = vld [vmem:[%s833 + $0x78] sm:$0xff]
          %v1146 = vld [vmem:[%s836] sm:$0x1]
          %v1148 = vperm.slane %v1146, 0
          %1150 = vmatpush.msra.mxu0 %v1145
          %1151 = vmatpush.msra.mxu0 %v1144
          %1152 = vmatpush.msra.mxu0 %v1143
          %1153 = vmatpush.msra.mxu0 %v1142
          %1154 = vmatpush.msra.mxu0 %v1141
          %1155 = vmatpush.msra.mxu0 %v1140
          %1156 = vmatpush.msra.mxu0 %v1139
          %1157 = vmatpush.msra.mxu0 %v1138
          %1158 = vmatpush.msra.mxu0 %v1137
          %1159 = vmatpush.msra.mxu0 %v1136
          %1160 = vmatpush.msra.mxu0 %v1135
          %1161 = vmatpush.msra.mxu0 %v1134
          %1162 = vmatpush.msra.mxu0 %v1133
          %1163 = vmatpush.msra.mxu0 %v1132
          %1164 = vmatpush.msra.mxu0 %v1131
          %1165 = vmatpush.msra.mxu0 %v1130
          %1166 = vmatmul.f32.gmra.mxu0 %v1119
          %v1167 = vpop.f32.mrf.mxu0
          %v1168 = vadd.f32 %v1148, %v1167
          %1169 = vmatmul.f32.gmra.mxu0 %v1122
          %v1170 = vpop.f32.mrf.mxu0
          %v1171 = vadd.f32 %v1148, %v1170
          %1172 = vmatmul.f32.gmra.mxu0 %v1125
          %v1173 = vpop.f32.mrf.mxu0
          %v1174 = vadd.f32 %v1148, %v1173
          %1175 = vmatmul.f32.gmra.mxu0 %v1128
          %v1176 = vpop.f32.mrf.mxu0
          %v1177 = vadd.f32 %v1148, %v1176
          %1178 = vdwg.mxu0
          %v1179 = vmul.f32 %v1168, 0.5
          %v1180 = vmul.f32 %v1171, 0.5
          %v1181 = vmul.f32 %v1174, 0.5
          %v1182 = vmul.f32 %v1177, 0.5
          %v1183 = vmul.f32 %v1168, 0.70710677
          %v1184 = vmul.f32 %v1171, 0.70710677
          %v1185 = vmul.f32 %v1174, 0.70710677
          %v1186 = vmul.f32 %v1177, 0.70710677
          %v1187 = vmul.f32 %v1183, %v1183
          %v1188 = vmin.f32 16.0, %v1187
          %v1189 = vmul.f32 %v1188, 2.1237322e-06
          %v1190 = vadd.f32 %v1189, 0.00028619796
          %v1191 = vmul.f32 %v1188, %v1190
          %v1192 = vadd.f32 %v1191, 0.0036580483
          %v1193 = vmul.f32 %v1188, %v1192
          %v1194 = vadd.f32 %v1193, 0.05243302
          %v1195 = vmul.f32 %v1188, %v1194
          %v1196 = vadd.f32 %v1195, 0.18741608
          %v1197 = vmul.f32 %v1188, %v1196
          %v1198 = vadd.f32 %v1197, 1.1283791
          %v1199 = vmul.f32 %v1183, %v1198
          %v1200 = vmul.f32 %v1188, 3.8918573e-05
          %v1201 = vadd.f32 %v1200, 0.001143296
          %v1202 = vmul.f32 %v1188, %v1201
          %v1203 = vadd.f32 %v1202, 0.014752088
          %v1204 = vmul.f32 %v1188, %v1203
          %v1205 = vadd.f32 %v1204, 0.112945676
          %v1206 = vmul.f32 %v1188, %v1205
          %v1207 = vadd.f32 %v1206, 0.4994258
          %v1208 = vmul.f32 %v1188, %v1207
          %v1209 = vadd.f32 %v1208, 1.0
          %v1210 = vrcp.pop %v1209
          %v1211 = vmul.f32 %v1209, %v1210
          %v1212 = vsub.f32 1.0, %v1211
          %v1213 = vmul.f32 %v1210, %v1212
          %v1214 = vadd.f32 %v1210, %v1213
          %vm1215 = vweird.f32 %v1209
          %vm1216 = vweird.f32 %v1210
          %vm1217 = vmor %vm1215, %vm1216
          %v1218 = vsel %vm1217, %v1210, %v1214
          %v1219 = vand.u32 2147483647, %v1209
          %vm1220 = vcmp.eq.f32.partialorder %v1219, 8.507059e+37
          %v1221 = vand.u32 %v1209, 2147483648
          %v1222 = vor.u32 1.1754944e-38, %v1221
          %v1223 = vsel %vm1220, %v1222, %v1218
          %v1224 = vmul.f32 %v1199, %v1223
          %v1225 = vmin.f32 %v1224, 1.0
          %v1226 = vmax.f32 %v1225, -1.0
          %v1227 = vmul.f32 %v1184, %v1184
          %v1228 = vmin.f32 16.0, %v1227
          %v1229 = vmul.f32 %v1228, 2.1237322e-06
          %v1230 = vadd.f32 %v1229, 0.00028619796
          %v1231 = vmul.f32 %v1228, %v1230
          %v1232 = vadd.f32 %v1231, 0.0036580483
          %v1233 = vmul.f32 %v1228, %v1232
          %v1234 = vadd.f32 %v1233, 0.05243302
          %v1235 = vmul.f32 %v1228, %v1234
          %v1236 = vadd.f32 %v1235, 0.18741608
          %v1237 = vmul.f32 %v1228, %v1236
          %v1238 = vadd.f32 %v1237, 1.1283791
          %v1239 = vmul.f32 %v1184, %v1238
          %v1240 = vmul.f32 %v1228, 3.8918573e-05
          %v1241 = vadd.f32 %v1240, 0.001143296
          %v1242 = vmul.f32 %v1228, %v1241
          %v1243 = vadd.f32 %v1242, 0.014752088
          %v1244 = vmul.f32 %v1228, %v1243
          %v1245 = vadd.f32 %v1244, 0.112945676
          %v1246 = vmul.f32 %v1228, %v1245
          %v1247 = vadd.f32 %v1246, 0.4994258
          %v1248 = vmul.f32 %v1228, %v1247
          %v1249 = vadd.f32 %v1248, 1.0
          %v1250 = vrcp.pop %v1249
          %v1251 = vmul.f32 %v1249, %v1250
          %v1252 = vsub.f32 1.0, %v1251
          %v1253 = vmul.f32 %v1250, %v1252
          %v1254 = vadd.f32 %v1250, %v1253
          %vm1255 = vweird.f32 %v1249
          %vm1256 = vweird.f32 %v1250
          %vm1257 = vmor %vm1255, %vm1256
          %v1258 = vsel %vm1257, %v1250, %v1254
          %v1259 = vand.u32 2147483647, %v1249
          %vm1260 = vcmp.eq.f32.partialorder %v1259, 8.507059e+37
          %v1261 = vand.u32 %v1249, 2147483648
          %v1262 = vor.u32 1.1754944e-38, %v1261
          %v1263 = vsel %vm1260, %v1262, %v1258
          %v1264 = vmul.f32 %v1239, %v1263
          %v1265 = vmin.f32 %v1264, 1.0
          %v1266 = vmax.f32 %v1265, -1.0
          %v1267 = vmul.f32 %v1185, %v1185
          %v1268 = vmin.f32 16.0, %v1267
          %v1269 = vmul.f32 %v1268, 2.1237322e-06
          %v1270 = vadd.f32 %v1269, 0.00028619796
          %v1271 = vmul.f32 %v1268, %v1270
          %v1272 = vadd.f32 %v1271, 0.0036580483
          %v1273 = vmul.f32 %v1268, %v1272
          %v1274 = vadd.f32 %v1273, 0.05243302
          %v1275 = vmul.f32 %v1268, %v1274
          %v1276 = vadd.f32 %v1275, 0.18741608
          %v1277 = vmul.f32 %v1268, %v1276
          %v1278 = vadd.f32 %v1277, 1.1283791
          %v1279 = vmul.f32 %v1185, %v1278
          %v1280 = vmul.f32 %v1268, 3.8918573e-05
          %v1281 = vadd.f32 %v1280, 0.001143296
          %v1282 = vmul.f32 %v1268, %v1281
          %v1283 = vadd.f32 %v1282, 0.014752088
          %v1284 = vmul.f32 %v1268, %v1283
          %v1285 = vadd.f32 %v1284, 0.112945676
          %v1286 = vmul.f32 %v1268, %v1285
          %v1287 = vadd.f32 %v1286, 0.4994258
          %v1288 = vmul.f32 %v1268, %v1287
          %v1289 = vadd.f32 %v1288, 1.0
          %v1290 = vrcp.pop %v1289
          %v1291 = vmul.f32 %v1289, %v1290
          %v1292 = vsub.f32 1.0, %v1291
          %v1293 = vmul.f32 %v1290, %v1292
          %v1294 = vadd.f32 %v1290, %v1293
          %vm1295 = vweird.f32 %v1289
          %vm1296 = vweird.f32 %v1290
          %vm1297 = vmor %vm1295, %vm1296
          %v1298 = vsel %vm1297, %v1290, %v1294
          %v1299 = vand.u32 2147483647, %v1289
          %vm1300 = vcmp.eq.f32.partialorder %v1299, 8.507059e+37
          %v1301 = vand.u32 %v1289, 2147483648
          %v1302 = vor.u32 1.1754944e-38, %v1301
          %v1303 = vsel %vm1300, %v1302, %v1298
          %v1304 = vmul.f32 %v1279, %v1303
          %v1305 = vmin.f32 %v1304, 1.0
          %v1306 = vmax.f32 %v1305, -1.0
          %v1307 = vmul.f32 %v1186, %v1186
          %v1308 = vmin.f32 16.0, %v1307
          %v1309 = vmul.f32 %v1308, 2.1237322e-06
          %v1310 = vadd.f32 %v1309, 0.00028619796
          %v1311 = vmul.f32 %v1308, %v1310
          %v1312 = vadd.f32 %v1311, 0.0036580483
          %v1313 = vmul.f32 %v1308, %v1312
          %v1314 = vadd.f32 %v1313, 0.05243302
          %v1315 = vmul.f32 %v1308, %v1314
          %v1316 = vadd.f32 %v1315, 0.18741608
          %v1317 = vmul.f32 %v1308, %v1316
          %v1318 = vadd.f32 %v1317, 1.1283791
          %v1319 = vmul.f32 %v1186, %v1318
          %v1320 = vmul.f32 %v1308, 3.8918573e-05
          %v1321 = vadd.f32 %v1320, 0.001143296
          %v1322 = vmul.f32 %v1308, %v1321
          %v1323 = vadd.f32 %v1322, 0.014752088
          %v1324 = vmul.f32 %v1308, %v1323
          %v1325 = vadd.f32 %v1324, 0.112945676
          %v1326 = vmul.f32 %v1308, %v1325
          %v1327 = vadd.f32 %v1326, 0.4994258
          %v1328 = vmul.f32 %v1308, %v1327
          %v1329 = vadd.f32 %v1328, 1.0
          %v1330 = vrcp.pop %v1329
          %v1331 = vmul.f32 %v1329, %v1330
          %v1332 = vsub.f32 1.0, %v1331
          %v1333 = vmul.f32 %v1330, %v1332
          %v1334 = vadd.f32 %v1330, %v1333
          %vm1335 = vweird.f32 %v1329
          %vm1336 = vweird.f32 %v1330
          %vm1337 = vmor %vm1335, %vm1336
          %v1338 = vsel %vm1337, %v1330, %v1334
          %v1339 = vand.u32 2147483647, %v1329
          %vm1340 = vcmp.eq.f32.partialorder %v1339, 8.507059e+37
          %v1341 = vand.u32 %v1329, 2147483648
          %v1342 = vor.u32 1.1754944e-38, %v1341
          %v1343 = vsel %vm1340, %v1342, %v1338
          %v1344 = vmul.f32 %v1319, %v1343
          %v1345 = vmin.f32 %v1344, 1.0
          %v1346 = vmax.f32 %v1345, -1.0
          %v1347 = vadd.f32 %v1226, 1.0
          %v1348 = vadd.f32 %v1266, 1.0
          %v1349 = vadd.f32 %v1306, 1.0
          %v1350 = vadd.f32 %v1346, 1.0
          %v1351 = vmul.f32 %v1179, %v1347
          %v1352 = vmul.f32 %v1180, %v1348
          %v1353 = vmul.f32 %v1181, %v1349
          %v1354 = vmul.f32 %v1182, %v1350
          %v1355 = vld [vmem:[#allocation12] sm:$0xff]
          %v1356 = vld [vmem:[#allocation12 + $0x8] sm:$0xff]
          %v1357 = vld [vmem:[#allocation12 + $0x10] sm:$0xff]
          %v1358 = vld [vmem:[#allocation12 + $0x18] sm:$0xff]
          %v1359 = vld [vmem:[#allocation13] sm:$0x1]
          %v1361 = vperm.slane %v1359, 0
          %vm1363 = vcmask 261120
          %v1365 = vsel %vm1363, %v1351, 0
          %v1368 = vsel %vm1363, %v1352, 0
          %v1371 = vsel %vm1363, %v1353, 0
          %v1374 = vsel %vm1363, %v1354, 0
          %1376 = vmatpush.msra.mxu0 0.0
          %1377 = vmatpush.msra.mxu0 0.0
          %1378 = vmatpush.msra.mxu0 0.0
          %1379 = vmatpush.msra.mxu0 0.0
          %1380 = vmatpush.msra.mxu0 0.0
          %1381 = vmatpush.msra.mxu0 0.0
          %1382 = vmatpush.msra.mxu0 0.0
          %1383 = vmatpush.msra.mxu0 0.0
          %1384 = vmatpush.msra.mxu0 0.0
          %1385 = vmatpush.msra.mxu0 0.0
          %1386 = vmatpush.msra.mxu0 0.0
          %1387 = vmatpush.msra.mxu0 0.0
          %1388 = vmatpush.msra.mxu0 %v1358
          %1389 = vmatpush.msra.mxu0 %v1357
          %1390 = vmatpush.msra.mxu0 %v1356
          %1391 = vmatpush.msra.mxu0 %v1355
          %1392 = vmatmul.f32.gmra.mxu0 %v1365
          %v1393 = vpop.f32.mrf.mxu0
          %v1394 = vadd.f32 %v1361, %v1393
          %1395 = vmatmul.f32.gmra.mxu0 %v1368
          %v1396 = vpop.f32.mrf.mxu0
          %v1397 = vadd.f32 %v1361, %v1396
          %1398 = vmatmul.f32.gmra.mxu0 %v1371
          %v1399 = vpop.f32.mrf.mxu0
          %v1400 = vadd.f32 %v1361, %v1399
          %1401 = vmatmul.f32.gmra.mxu0 %v1374
          %v1402 = vpop.f32.mrf.mxu0
          %v1403 = vadd.f32 %v1361, %v1402
          %1404 = vdwg.mxu0
          %v1405 = vadd.f32 %v848, %v1394
          %v1406 = vadd.f32 %v849, %v1397
          %v1407 = vadd.f32 %v850, %v1400
          %v1408 = vadd.f32 %v851, %v1403
          %v1409 = vld [vmem:[#allocation15] sm:$0xff]
          %v1410 = vld [vmem:[#allocation15 + $0x8] sm:$0xff]
          %v1411 = vld [vmem:[#allocation15 + $0x10] sm:$0xff]
          %v1412 = vld [vmem:[#allocation15 + $0x18] sm:$0xff]
          %v1413 = vld [vmem:[#allocation16] sm:$0x1]
          %v1415 = vperm.slane %v1413, 0
          %v1418 = vsel %vm1363, %v1405, 0
          %v1421 = vsel %vm1363, %v1406, 0
          %v1424 = vsel %vm1363, %v1407, 0
          %v1427 = vsel %vm1363, %v1408, 0
          %1429 = vmatpush.msra.mxu0 0.0
          %1430 = vmatpush.msra.mxu0 0.0
          %1431 = vmatpush.msra.mxu0 0.0
          %1432 = vmatpush.msra.mxu0 0.0
          %1433 = vmatpush.msra.mxu0 0.0
          %1434 = vmatpush.msra.mxu0 0.0
          %1435 = vmatpush.msra.mxu0 0.0
          %1436 = vmatpush.msra.mxu0 0.0
          %1437 = vmatpush.msra.mxu0 0.0
          %1438 = vmatpush.msra.mxu0 0.0
          %1439 = vmatpush.msra.mxu0 0.0
          %1440 = vmatpush.msra.mxu0 0.0
          %1441 = vmatpush.msra.mxu0 %v1412
          %1442 = vmatpush.msra.mxu0 %v1411
          %1443 = vmatpush.msra.mxu0 %v1410
          %1444 = vmatpush.msra.mxu0 %v1409
          %1445 = vmatmul.f32.gmra.mxu0 %v1418
          %v1446 = vpop.f32.mrf.mxu0
          %v1447 = vadd.f32 %v1415, %v1446
          %1448 = vmatmul.f32.gmra.mxu0 %v1421
          %v1449 = vpop.f32.mrf.mxu0
          %v1450 = vadd.f32 %v1415, %v1449
          %1451 = vmatmul.f32.gmra.mxu0 %v1424
          %v1452 = vpop.f32.mrf.mxu0
          %v1453 = vadd.f32 %v1415, %v1452
          %1454 = vmatmul.f32.gmra.mxu0 %v1427
          %v1455 = vpop.f32.mrf.mxu0
          %v1456 = vadd.f32 %v1415, %v1455
          %1457 = vdwg.mxu0
          %v1458 = vmul.f32 %v1447, 0.5
          %v1459 = vmul.f32 %v1450, 0.5
          %v1460 = vmul.f32 %v1453, 0.5
          %v1461 = vmul.f32 %v1456, 0.5
          %v1462 = vmul.f32 %v1447, 0.70710677
          %v1463 = vmul.f32 %v1450, 0.70710677
          %v1464 = vmul.f32 %v1453, 0.70710677
          %v1465 = vmul.f32 %v1456, 0.70710677
          %v1466 = vmul.f32 %v1462, %v1462
          %v1467 = vmin.f32 16.0, %v1466
          %v1468 = vmul.f32 %v1467, 2.1237322e-06
          %v1469 = vadd.f32 %v1468, 0.00028619796
          %v1470 = vmul.f32 %v1467, %v1469
          %v1471 = vadd.f32 %v1470, 0.0036580483
          %v1472 = vmul.f32 %v1467, %v1471
          %v1473 = vadd.f32 %v1472, 0.05243302
          %v1474 = vmul.f32 %v1467, %v1473
          %v1475 = vadd.f32 %v1474, 0.18741608
          %v1476 = vmul.f32 %v1467, %v1475
          %v1477 = vadd.f32 %v1476, 1.1283791
          %v1478 = vmul.f32 %v1462, %v1477
          %v1479 = vmul.f32 %v1467, 3.8918573e-05
          %v1480 = vadd.f32 %v1479, 0.001143296
          %v1481 = vmul.f32 %v1467, %v1480
          %v1482 = vadd.f32 %v1481, 0.014752088
          %v1483 = vmul.f32 %v1467, %v1482
          %v1484 = vadd.f32 %v1483, 0.112945676
          %v1485 = vmul.f32 %v1467, %v1484
          %v1486 = vadd.f32 %v1485, 0.4994258
          %v1487 = vmul.f32 %v1467, %v1486
          %v1488 = vadd.f32 %v1487, 1.0
          %v1489 = vrcp.pop %v1488
          %v1490 = vmul.f32 %v1488, %v1489
          %v1491 = vsub.f32 1.0, %v1490
          %v1492 = vmul.f32 %v1489, %v1491
          %v1493 = vadd.f32 %v1489, %v1492
          %vm1494 = vweird.f32 %v1488
          %vm1495 = vweird.f32 %v1489
          %vm1496 = vmor %vm1494, %vm1495
          %v1497 = vsel %vm1496, %v1489, %v1493
          %v1498 = vand.u32 2147483647, %v1488
          %vm1499 = vcmp.eq.f32.partialorder %v1498, 8.507059e+37
          %v1500 = vand.u32 %v1488, 2147483648
          %v1501 = vor.u32 1.1754944e-38, %v1500
          %v1502 = vsel %vm1499, %v1501, %v1497
          %v1503 = vmul.f32 %v1478, %v1502
          %v1504 = vmin.f32 %v1503, 1.0
          %v1505 = vmax.f32 %v1504, -1.0
          %v1506 = vmul.f32 %v1463, %v1463
          %v1507 = vmin.f32 16.0, %v1506
          %v1508 = vmul.f32 %v1507, 2.1237322e-06
          %v1509 = vadd.f32 %v1508, 0.00028619796
          %v1510 = vmul.f32 %v1507, %v1509
          %v1511 = vadd.f32 %v1510, 0.0036580483
          %v1512 = vmul.f32 %v1507, %v1511
          %v1513 = vadd.f32 %v1512, 0.05243302
          %v1514 = vmul.f32 %v1507, %v1513
          %v1515 = vadd.f32 %v1514, 0.18741608
          %v1516 = vmul.f32 %v1507, %v1515
          %v1517 = vadd.f32 %v1516, 1.1283791
          %v1518 = vmul.f32 %v1463, %v1517
          %v1519 = vmul.f32 %v1507, 3.8918573e-05
          %v1520 = vadd.f32 %v1519, 0.001143296
          %v1521 = vmul.f32 %v1507, %v1520
          %v1522 = vadd.f32 %v1521, 0.014752088
          %v1523 = vmul.f32 %v1507, %v1522
          %v1524 = vadd.f32 %v1523, 0.112945676
          %v1525 = vmul.f32 %v1507, %v1524
          %v1526 = vadd.f32 %v1525, 0.4994258
          %v1527 = vmul.f32 %v1507, %v1526
          %v1528 = vadd.f32 %v1527, 1.0
          %v1529 = vrcp.pop %v1528
          %v1530 = vmul.f32 %v1528, %v1529
          %v1531 = vsub.f32 1.0, %v1530
          %v1532 = vmul.f32 %v1529, %v1531
          %v1533 = vadd.f32 %v1529, %v1532
          %vm1534 = vweird.f32 %v1528
          %vm1535 = vweird.f32 %v1529
          %vm1536 = vmor %vm1534, %vm1535
          %v1537 = vsel %vm1536, %v1529, %v1533
          %v1538 = vand.u32 2147483647, %v1528
          %vm1539 = vcmp.eq.f32.partialorder %v1538, 8.507059e+37
          %v1540 = vand.u32 %v1528, 2147483648
          %v1541 = vor.u32 1.1754944e-38, %v1540
          %v1542 = vsel %vm1539, %v1541, %v1537
          %v1543 = vmul.f32 %v1518, %v1542
          %v1544 = vmin.f32 %v1543, 1.0
          %v1545 = vmax.f32 %v1544, -1.0
          %v1546 = vmul.f32 %v1464, %v1464
          %v1547 = vmin.f32 16.0, %v1546
          %v1548 = vmul.f32 %v1547, 2.1237322e-06
          %v1549 = vadd.f32 %v1548, 0.00028619796
          %v1550 = vmul.f32 %v1547, %v1549
          %v1551 = vadd.f32 %v1550, 0.0036580483
          %v1552 = vmul.f32 %v1547, %v1551
          %v1553 = vadd.f32 %v1552, 0.05243302
          %v1554 = vmul.f32 %v1547, %v1553
          %v1555 = vadd.f32 %v1554, 0.18741608
          %v1556 = vmul.f32 %v1547, %v1555
          %v1557 = vadd.f32 %v1556, 1.1283791
          %v1558 = vmul.f32 %v1464, %v1557
          %v1559 = vmul.f32 %v1547, 3.8918573e-05
          %v1560 = vadd.f32 %v1559, 0.001143296
          %v1561 = vmul.f32 %v1547, %v1560
          %v1562 = vadd.f32 %v1561, 0.014752088
          %v1563 = vmul.f32 %v1547, %v1562
          %v1564 = vadd.f32 %v1563, 0.112945676
          %v1565 = vmul.f32 %v1547, %v1564
          %v1566 = vadd.f32 %v1565, 0.4994258
          %v1567 = vmul.f32 %v1547, %v1566
          %v1568 = vadd.f32 %v1567, 1.0
          %v1569 = vrcp.pop %v1568
          %v1570 = vmul.f32 %v1568, %v1569
          %v1571 = vsub.f32 1.0, %v1570
          %v1572 = vmul.f32 %v1569, %v1571
          %v1573 = vadd.f32 %v1569, %v1572
          %vm1574 = vweird.f32 %v1568
          %vm1575 = vweird.f32 %v1569
          %vm1576 = vmor %vm1574, %vm1575
          %v1577 = vsel %vm1576, %v1569, %v1573
          %v1578 = vand.u32 2147483647, %v1568
          %vm1579 = vcmp.eq.f32.partialorder %v1578, 8.507059e+37
          %v1580 = vand.u32 %v1568, 2147483648
          %v1581 = vor.u32 1.1754944e-38, %v1580
          %v1582 = vsel %vm1579, %v1581, %v1577
          %v1583 = vmul.f32 %v1558, %v1582
          %v1584 = vmin.f32 %v1583, 1.0
          %v1585 = vmax.f32 %v1584, -1.0
          %v1586 = vmul.f32 %v1465, %v1465
          %v1587 = vmin.f32 16.0, %v1586
          %v1588 = vmul.f32 %v1587, 2.1237322e-06
          %v1589 = vadd.f32 %v1588, 0.00028619796
          %v1590 = vmul.f32 %v1587, %v1589
          %v1591 = vadd.f32 %v1590, 0.0036580483
          %v1592 = vmul.f32 %v1587, %v1591
          %v1593 = vadd.f32 %v1592, 0.05243302
          %v1594 = vmul.f32 %v1587, %v1593
          %v1595 = vadd.f32 %v1594, 0.18741608
          %v1596 = vmul.f32 %v1587, %v1595
          %v1597 = vadd.f32 %v1596, 1.1283791
          %v1598 = vmul.f32 %v1465, %v1597
          %v1599 = vmul.f32 %v1587, 3.8918573e-05
          %v1600 = vadd.f32 %v1599, 0.001143296
          %v1601 = vmul.f32 %v1587, %v1600
          %v1602 = vadd.f32 %v1601, 0.014752088
          %v1603 = vmul.f32 %v1587, %v1602
          %v1604 = vadd.f32 %v1603, 0.112945676
          %v1605 = vmul.f32 %v1587, %v1604
          %v1606 = vadd.f32 %v1605, 0.4994258
          %v1607 = vmul.f32 %v1587, %v1606
          %v1608 = vadd.f32 %v1607, 1.0
          %v1609 = vrcp.pop %v1608
          %v1610 = vmul.f32 %v1608, %v1609
          %v1611 = vsub.f32 1.0, %v1610
          %v1612 = vmul.f32 %v1609, %v1611
          %v1613 = vadd.f32 %v1609, %v1612
          %vm1614 = vweird.f32 %v1608
          %vm1615 = vweird.f32 %v1609
          %vm1616 = vmor %vm1614, %vm1615
          %v1617 = vsel %vm1616, %v1609, %v1613
          %v1618 = vand.u32 2147483647, %v1608
          %vm1619 = vcmp.eq.f32.partialorder %v1618, 8.507059e+37
          %v1620 = vand.u32 %v1608, 2147483648
          %v1621 = vor.u32 1.1754944e-38, %v1620
          %v1622 = vsel %vm1619, %v1621, %v1617
          %v1623 = vmul.f32 %v1598, %v1622
          %v1624 = vmin.f32 %v1623, 1.0
          %v1625 = vmax.f32 %v1624, -1.0
          %v1626 = vadd.f32 %v1505, 1.0
          %v1627 = vadd.f32 %v1545, 1.0
          %v1628 = vadd.f32 %v1585, 1.0
          %v1629 = vadd.f32 %v1625, 1.0
          %v1630 = vmul.f32 %v1458, %v1626
          %v1631 = vmul.f32 %v1459, %v1627
          %v1632 = vmul.f32 %v1460, %v1628
          %v1633 = vmul.f32 %v1461, %v1629
          %v1634 = vld [vmem:[#allocation18] sm:$0xff]
          %v1635 = vld [vmem:[#allocation18 + $0x8] sm:$0xff]
          %v1636 = vld [vmem:[#allocation18 + $0x10] sm:$0xff]
          %v1637 = vld [vmem:[#allocation18 + $0x18] sm:$0xff]
          %v1638 = vld [vmem:[%s839] sm:$0x1]
          %v1640 = vperm.slane %v1638, 0
          %v1643 = vsel %vm1363, %v1630, 0
          %v1646 = vsel %vm1363, %v1631, 0
          %v1649 = vsel %vm1363, %v1632, 0
          %v1652 = vsel %vm1363, %v1633, 0
          %1654 = vmatpush.msra.mxu0 0.0
          %1655 = vmatpush.msra.mxu0 0.0
          %1656 = vmatpush.msra.mxu0 0.0
          %1657 = vmatpush.msra.mxu0 0.0
          %1658 = vmatpush.msra.mxu0 0.0
          %1659 = vmatpush.msra.mxu0 0.0
          %1660 = vmatpush.msra.mxu0 0.0
          %1661 = vmatpush.msra.mxu0 0.0
          %1662 = vmatpush.msra.mxu0 0.0
          %1663 = vmatpush.msra.mxu0 0.0
          %1664 = vmatpush.msra.mxu0 0.0
          %1665 = vmatpush.msra.mxu0 0.0
          %1666 = vmatpush.msra.mxu0 %v1637
          %1667 = vmatpush.msra.mxu0 %v1636
          %1668 = vmatpush.msra.mxu0 %v1635
          %1669 = vmatpush.msra.mxu0 %v1634
          %1670 = vmatmul.f32.gmra.mxu0 %v1643
          %v1671 = vpop.f32.mrf.mxu0
          %v1672 = vadd.f32 %v1640, %v1671
          %1673 = vmatmul.f32.gmra.mxu0 %v1646
          %v1674 = vpop.f32.mrf.mxu0
          %v1675 = vadd.f32 %v1640, %v1674
          %1676 = vmatmul.f32.gmra.mxu0 %v1649
          %v1677 = vpop.f32.mrf.mxu0
          %v1678 = vadd.f32 %v1640, %v1677
          %1679 = vmatmul.f32.gmra.mxu0 %v1652
          %v1680 = vpop.f32.mrf.mxu0
          %v1681 = vadd.f32 %v1640, %v1680
          %1682 = vdwg.mxu0
          %v1683 = vadd.f32 %v1119, %v1672
          %v1684 = vadd.f32 %v1122, %v1675
          %v1685 = vadd.f32 %v1125, %v1678
          %v1686 = vadd.f32 %v1128, %v1681
          %1687 = vst.msk [vmem:[%s805] sm:$0xff] %vm1363, %v1405
          %1688 = vst.msk [vmem:[%s805 + $0x8] sm:$0xff] %vm1363, %v1406
          %1689 = vst.msk [vmem:[%s805 + $0x10] sm:$0xff] %vm1363, %v1407
          %1690 = vst.msk [vmem:[%s805 + $0x18] sm:$0xff] %vm1363, %v1408
          %1691 = vst [vmem:[%s812] sm:$0xff] %v1683
          %1692 = vst [vmem:[%s812 + $0x8] sm:$0xff] %v1684
          %1693 = vst [vmem:[%s812 + $0x10] sm:$0xff] %v1685
          %1694 = vst [vmem:[%s812 + $0x18] sm:$0xff] %v1686
        $region116: #{tpu_custom_call.1} parent=75 // pred_fallthru
          _
        %s1695 = sand.u32 %s439, 1
        %s1696 = scalar_lea.sflag [#allocation6], %s1695
        %s1697 = sand.u32 %s439, 1
        %s1698 = smul.addr %s1697, 32
        %s1699 = scalar_lea.vmem [#allocation19], %s1698
        %s1700 = sand.u32 %s467, 1
        %s1701 = scalar_lea.sflag [#allocation21], %s1700
        %s1702 = sand.u32 %s467, 1
        %s1703 = smul.addr %s1702, 32
        %s1704 = scalar_lea.vmem [#allocation20], %s1703
        // Predicated region
        $region117: #{tpu_custom_call.1} parent=75 // pred_check
          %p1705 = pneg %p449
        $region118: #{tpu_custom_call.1} parent=75 // pred_check_branch
          %1707 = sbr.rel (%p1705) target = $region120
        $region119: #{tpu_custom_call.1} parent=75 // pred_region
          %s1708 = smul.u32 4, %s54
          %1710 = vsyncadd %s1696, 0
          %s1711 = smul.addr %s53, 4
          %s1712 = sadd.s32 %s1708, %s1711
          %s1713 = smul.addr %s1712, 8
          %s1714 = scalar_lea.hbm %s15, %s1713
          %s1715 = sshll.u32 %s1699, 4
          %s1716 = int_to_ptr.vmem [resolvable:$true] %s1715
          %s1717 = sshll.u32 %s1714, 4
          %s1718 = int_to_ptr.hbm [resolvable:$true] %s1717
          %1723 = dma.vmem_to_hbm [thread:$0]  %s1716, 512, %s1718, %s1696, 128, 128, 8
        $region120: #{tpu_custom_call.1} parent=75 // pred_fallthru
          _
        // Predicated region
        $region121: #{tpu_custom_call.1} parent=75 // pred_check
          %p1724 = pneg %p477
        $region122: #{tpu_custom_call.1} parent=75 // pred_check_branch
          %1726 = sbr.rel (%p1724) target = $region124
        $region123: #{tpu_custom_call.1} parent=75 // pred_region
          %s1727 = smul.u32 4, %s54
          %1729 = vsyncadd %s1701, 0
          %s1730 = smul.addr %s53, 4
          %s1731 = sadd.s32 %s1727, %s1730
          %s1732 = smul.addr %s1731, 8
          %s1733 = scalar_lea.hbm %s16, %s1732
          %s1734 = sshll.u32 %s1704, 4
          %s1735 = int_to_ptr.vmem [resolvable:$true] %s1734
          %s1736 = sshll.u32 %s1733, 4
          %s1737 = int_to_ptr.hbm [resolvable:$true] %s1736
          %1742 = dma.vmem_to_hbm [thread:$0]  %s1735, 512, %s1737, %s1701, 128, 128, 8
        $region124: #{tpu_custom_call.1} parent=75 // pred_fallthru
          _
      $region76: #{tpu_custom_call.1} parent=5 // pred_fallthru
        _
      %p1743 = scmp.le.s32.totalorder 2, %s44
      // Predicated region
      $region125: #{tpu_custom_call.1} parent=5 // pred_check
        %p1744 = pneg %p1743
      $region126: #{tpu_custom_call.1} parent=5 // pred_check_branch
        %1746 = sbr.rel (%p1744) target = $region128
      $region127: #{tpu_custom_call.1} parent=5 // pred_region
        %s1747 = ssub.s32 %s44, 2
        // Predicated region
        $region129: #{tpu_custom_call.1} parent=127 // pred_check
          %p1748 = pneg %p455
        $region130: #{tpu_custom_call.1} parent=127 // pred_check_branch
          %1750 = sbr.rel (%p1748) target = $region132
        $region131: #{tpu_custom_call.1} parent=127 // pred_region
          %s1751 = sand.u32 %s440, 1
          %s1752 = scalar_lea.sflag [#allocation6], %s1751
          %s1753 = sand.u32 %s440, 1
          %s1754 = smul.addr %s1753, 32
          %s1755 = scalar_lea.vmem [#allocation19], %s1754
          %1757 = dma.done %s1752, 512
        $region132: #{tpu_custom_call.1} parent=127 // pred_fallthru
          _
        // Predicated region
        $region133: #{tpu_custom_call.1} parent=127 // pred_check
          %p1758 = pneg %p483
        $region134: #{tpu_custom_call.1} parent=127 // pred_check_branch
          %1760 = sbr.rel (%p1758) target = $region136
        $region135: #{tpu_custom_call.1} parent=127 // pred_region
          %s1761 = sand.u32 %s468, 1
          %s1762 = scalar_lea.sflag [#allocation21], %s1761
          %s1763 = sand.u32 %s468, 1
          %s1764 = smul.addr %s1763, 32
          %s1765 = scalar_lea.vmem [#allocation20], %s1764
          %1767 = dma.done %s1762, 512
        $region136: #{tpu_custom_call.1} parent=127 // pred_fallthru
          _
      $region128: #{tpu_custom_call.1} parent=5 // pred_fallthru
        _
    $region6: #{tpu_custom_call.1} parent=1 // loop_footer
      %s48 = sadd.s32 1, %s44
    $region7: #{tpu_custom_call.1} parent=1 // loop_footer_branch
      %43 = sbr.rel target = $region3
    $region8: #{tpu_custom_call.1} parent=1 // loop_exit
      _
    %1768 = vsyncpa [#allocation5], 1
    %s1769 = scalar_lea.sflag [#allocation5], 1
    %1770 = vsyncpa %s1769, 1
    %1771 = vsyncpa [#allocation8], 1
    %1772 = vsyncpa [#allocation11], 1
    %1773 = vsyncpa [#allocation14], 1
    %1774 = vsyncpa [#allocation17], 1
    %1775 = vsyncpa [#allocation6], 1
    %s1776 = scalar_lea.sflag [#allocation6], 1
    %1777 = vsyncpa %s1776, 1
    %1778 = vsyncpa [#allocation21], 1
    %s1779 = scalar_lea.sflag [#allocation21], 1
    %1780 = vsyncpa %s1779, 1

</llo_original>
